<compile_context>
chip_gen: v6e
topology: v6e:2x2x1
jax: 0.10.0
libtpu: 0.0.40
codegen_flags: <defaults>
</compile_context>

<pallas_src>
import functools

import jax
import jax.numpy as jnp
import numpy as np
from jax import lax
from jax.experimental import pallas as pl
from jax.experimental.pallas import tpu as pltpu


# ----------------------------------------------------------------------------
# Fused per-fnode Pallas kernel
# ----------------------------------------------------------------------------

def _fnode_kernel(meta, H, W, C, ew_ref, *refs):
    """Fused BiFPN fnode: resample -> fastattn combine -> Swish -> dw3x3 -> pw1x1+bias.

    meta: tuple of (kind, has_conv) per input, kind in {'same', 'pool', 'up'} (static).
    Ref order: per input: src [, conv_w (Ci,C), conv_b (1,C)] [, U (H*W, H2*W2)];
               then dw (9,1,C), pw_w (C,C), pw_b (1,C); out (1,H*W,C);
               scratch xpad (H,W+2,C) f32, dwflat (H*W,C) f32.
    Grid is over the batch dim, so every activation block has leading dim 1.
    """
    idx = 0
    edges = []
    for kind, has_conv in meta:
        src = refs[idx]
        idx += 1
        rw = rb = up = None
        if has_conv:
            rw, rb = refs[idx], refs[idx + 1]
            idx += 2
        if kind == 'up':
            up = refs[idx]
            idx += 1
        edges.append((kind, src, rw, rb, up))
    dw_ref, pww_ref, pwb_ref, o_ref, xpad_ref, dwflat_ref = refs[idx:idx + 6]

    # fastattn: relu(edge_weights) / (sum + 1e-4), single scalar reciprocal (SMEM math).
    k = len(meta)
    ws = [jnp.maximum(ew_ref[i], 0.0) for i in range(k)]
    total = ws[0]
    for i in range(1, k):
        total = total + ws[i]
    inv = 1.0 / (total + 1e-4)
    coefs = [w * inv for w in ws]

    HW = H * W

    # ---- Combine: resample each input and accumulate the weighted sum. ----
    flat_acc = None   # (H*W, C) f32 — 'same' and 'up' contributions (batched matmuls)
    pool_acc = None   # (H, W, C) f32 — max-pooled contributions
    for (kind, src, rw, rb, up), cf in zip(edges, coefs):
        if kind == 'pool':
            # 2x2 / stride-2 max pool: source pre-reshaped to (H, 2, W, 2, Ci) in the
            # wrapper (free), reduced with two elementwise maxima (no strided loads).
            s = src[0]                                   # (H, 2, W, 2, Ci)
            s = jnp.maximum(s[:, 0], s[:, 1])            # (H, W, 2, Ci)
            s = jnp.maximum(s[:, :, 0, :], s[:, :, 1, :])  # (H, W, Ci)
            contrib = s.astype(jnp.float32) * cf
            pool_acc = contrib if pool_acc is None else pool_acc + contrib
        else:
            x = src[0].astype(jnp.float32)               # (rows, Ci), rows = H*W or H2*W2
            if rw is not None:
                # fused 1x1 resample conv + bias, batched over ALL rows (M = rows)
                x = jnp.dot(x, rw[...], preferred_element_type=jnp.float32) + rb[...]
            if kind == 'up':
                # nearest-2x upsample as one 0/1 replication matmul (exact)
                x = jnp.dot(up[...], x, preferred_element_type=jnp.float32)
            contrib = x * cf
            flat_acc = contrib if flat_acc is None else flat_acc + contrib

    # ---- Swish, staged into the zero-padded depthwise stencil scratch. ----
    zcol = jnp.zeros((H, 1, C), jnp.float32)
    xpad_ref[:, 0:1, :] = zcol
    xpad_ref[:, W + 1:W + 2, :] = zcol

    if pool_acc is None:
        xact = flat_acc * jax.nn.sigmoid(flat_acc)       # Swish, whole block at once
        for h in range(H):
            xpad_ref[h, 1:W + 1, :] = xact[h * W:(h + 1) * W, :]
    else:
        for h in range(H):
            r = pool_acc[h]
            if flat_acc is not None:
                r = r + flat_acc[h * W:(h + 1) * W, :]
            r = r * jax.nn.sigmoid(r)                    # Swish
            xpad_ref[h, 1:W + 1, :] = r

    # ---- Depthwise 3x3 (zero pad), rows staged flat for ONE trailing matmul. ----
    dwt = dw_ref[...]                                    # (9, 1, C), loaded once
    taps = [dwt[j] for j in range(9)]                    # each (1, C), hoisted
    for h in range(H):
        acc = None
        for dh in (-1, 0, 1):
            hh = h + dh
            if hh < 0 or hh >= H:                        # zero-pad rows: skip statically
                continue
            rowp = xpad_ref[hh]                          # (W+2, C), one load per (h, dh)
            for dwi in range(3):
                t = rowp[dwi:dwi + W, :] * taps[3 * (dh + 1) + dwi]
                acc = t if acc is None else acc + t
        dwflat_ref[pl.ds(h * W, W), :] = acc

    # ---- Trailing 1x1 conv + bias: ONE (H*W, C) x (C, C) MXU matmul. ----
    y = jnp.dot(dwflat_ref[...], pww_ref[...],
                preferred_element_type=jnp.float32) + pwb_ref[...]
    o_ref[0] = y.astype(o_ref.dtype)


def _upsample_matrix(H2, W2):
    """(H*W, H2*W2) 0/1 matrix implementing nearest-neighbor 2x upsample via matmul."""
    H, W = 2 * H2, 2 * W2
    U = np.zeros((H * W, H2 * W2), np.float32)
    for h in range(H):
        for w in range(W):
            U[h * W + w, (h // 2) * W2 + (w // 2)] = 1.0
    return jnp.asarray(U)


def fused_fnode(inputs, edge_weights, dw_w, pw_w, pw_b, fpn_channels):
    """One pallas_call for a whole fnode.

    inputs: list of dicts {'x': NHWC source array,
                           'kind': 'same'|'pool'|'up',
                           'conv': None or (w (Ci,C), b (C,))}
    """
    N = inputs[0]['x'].shape[0]
    C = fpn_channels

    def target_hw(inp):
        _, Hs, Ws, _ = inp['x'].shape
        if inp['kind'] == 'pool':
            return Hs // 2, Ws // 2
        if inp['kind'] == 'up':
            return Hs * 2, Ws * 2
        return Hs, Ws

    H, W = target_hw(inputs[0])
    for inp in inputs[1:]:
        assert target_hw(inp) == (H, W)
    HW = H * W

    meta = []
    args = [edge_weights]
    in_specs = [pl.BlockSpec((len(inputs),), lambda n: (0,),
                             memory_space=pltpu.MemorySpace.SMEM)]
    for inp in inputs:
        x = inp['x']
        _, Hs, Ws, Ci = x.shape
        kind = inp['kind']
        has_conv = inp['conv'] is not None
        if kind == 'pool':
            # TODO(synk): conv-after-downsample on pool edges is unused in this config;
            # not fused here.
            assert not has_conv, "pool edge with resample conv not supported"
            xr = x.reshape(N, H, 2, W, 2, Ci)            # free metadata reshape
            args.append(xr)
            in_specs.append(pl.BlockSpec((1, H, 2, W, 2, Ci),
                                         lambda n: (n, 0, 0, 0, 0, 0)))
        else:
            xr = x.reshape(N, Hs * Ws, Ci)               # free metadata reshape
            args.append(xr)
            in_specs.append(pl.BlockSpec((1, Hs * Ws, Ci), lambda n: (n, 0, 0)))
        if has_conv:
            w, b = inp['conv']
            args.append(w)
            in_specs.append(pl.BlockSpec(w.shape, lambda n: (0, 0)))
            args.append(b.reshape(1, C))
            in_specs.append(pl.BlockSpec((1, C), lambda n: (0, 0)))
        if kind == 'up':
            U = _upsample_matrix(Hs, Ws)
            args.append(U)
            in_specs.append(pl.BlockSpec(U.shape, lambda n: (0, 0)))
        meta.append((kind, has_conv))

    args += [dw_w.reshape(9, 1, C), pw_w, pw_b.reshape(1, C)]
    in_specs += [pl.BlockSpec((9, 1, C), lambda n: (0, 0, 0)),
                 pl.BlockSpec(pw_w.shape, lambda n: (0, 0)),
                 pl.BlockSpec((1, C), lambda n: (0, 0))]

    kernel = functools.partial(_fnode_kernel, tuple(meta), H, W, C)
    out_flat = pl.pallas_call(
        kernel,
        out_shape=jax.ShapeDtypeStruct((N, HW, C), inputs[0]['x'].dtype),
        grid=(N,),
        in_specs=in_specs,
        out_specs=pl.BlockSpec((1, HW, C), lambda n: (n, 0, 0)),
        scratch_shapes=[pltpu.VMEM((H, W + 2, C), jnp.float32),
                        pltpu.VMEM((HW, C), jnp.float32)],
        compiler_params=pltpu.CompilerParams(
            dimension_semantics=("parallel",)),  # v7x: shard batch over the 2 TCs
    )(*args)
    return out_flat.reshape(N, H, W, C)


# ----------------------------------------------------------------------------
# BiFpnLayer config / params / forward
# ----------------------------------------------------------------------------

FPN_CONFIG = {
    'nodes': [
        {'reduction': 64,  'inputs_offsets': [3, 4]},
        {'reduction': 32,  'inputs_offsets': [2, 5]},
        {'reduction': 16,  'inputs_offsets': [1, 6]},
        {'reduction': 8,   'inputs_offsets': [0, 7]},
        {'reduction': 16,  'inputs_offsets': [1, 7, 8]},
        {'reduction': 32,  'inputs_offsets': [2, 6, 9]},
        {'reduction': 64,  'inputs_offsets': [3, 5, 10]},
        {'reduction': 128, 'inputs_offsets': [4, 11]},
    ],
    'weight_method': 'fastattn',
}


def init_params(key, feature_info, fpn_config, fpn_channels):
    num_feats = len(feature_info)
    params = {'nodes': []}
    for cfg in fpn_config['nodes']:
        node = {'resample': {}}
        for off in cfg['inputs_offsets']:
            in_ch = feature_info[off]['num_chs'] if off < num_feats else fpn_channels
            if in_ch != fpn_channels:
                key, k1, k2 = jax.random.split(key, 3)
                node['resample'][off] = {
                    'w': jax.random.normal(k1, (in_ch, fpn_channels), jnp.float32)
                         * (1.0 / np.sqrt(in_ch)),
                    'b': jax.random.normal(k2, (fpn_channels,), jnp.float32) * 0.01,
                }
        # nn.Parameter(torch.ones(len(inputs_offsets)))
        node['edge_weights'] = jnp.ones((len(cfg['inputs_offsets']),), jnp.float32)
        key, k1, k2, k3 = jax.random.split(key, 4)
        node['dw'] = jax.random.normal(k1, (9, fpn_channels), jnp.float32) / 3.0
        node['pw_w'] = (jax.random.normal(k2, (fpn_channels, fpn_channels), jnp.float32)
                        * (1.0 / np.sqrt(fpn_channels)))
        node['pw_b'] = jax.random.normal(k3, (fpn_channels,), jnp.float32) * 0.01
        params['nodes'].append(node)
    return params


def bifpn_layer_forward(x_list_nchw, params, feature_info, fpn_config,
                        fpn_channels, num_levels=5):
    """Mirrors BiFpnLayer.forward. NCHW in / NCHW out (torch layout); the network
    runs NHWC end-to-end, transposing only at this model boundary."""
    nodes = [jnp.transpose(x, (0, 2, 3, 1)) for x in x_list_nchw]   # -> NHWC
    reds = [fi['reduction'] for fi in feature_info]

    for i, cfg in enumerate(fpn_config['nodes']):
        p = params['nodes'][i]
        target_red = cfg['reduction']
        inputs = []
        for off in cfg['inputs_offsets']:
            x = nodes[off]
            ratio = target_red / reds[off]
            assert ratio in (0.5, 1.0, 2.0)
            rp = p['resample'].get(off)
            conv = (rp['w'], rp['b']) if rp is not None else None
            kind = {0.5: 'up', 1.0: 'same', 2.0: 'pool'}[ratio]
            inputs.append({'x': x, 'kind': kind, 'conv': conv})
        y = fused_fnode(inputs, p['edge_weights'], p['dw'], p['pw_w'], p['pw_b'],
                        fpn_channels)
        nodes.append(y)
        reds.append(target_red)

    return [jnp.transpose(n, (0, 3, 1, 2)) for n in nodes[-num_levels:]]   # -> NCHW


# ----------------------------------------------------------------------------
# Pure-JAX reference of the same forward (correctness check)
# ----------------------------------------------------------------------------

def _ref_pw(x, w, b):
    return jnp.einsum('nhwc,cd->nhwd', x, w) + b


def _ref_maxpool2x2(x):
    N, H, W, C = x.shape
    return x.reshape(N, H // 2, 2, W // 2, 2, C).max(axis=(2, 4))


def bifpn_layer_forward_ref(x_list_nchw, params, feature_info, fpn_config,
                            fpn_channels, num_levels=5):
    nodes = [jnp.transpose(x, (0, 2, 3, 1)) for x in x_list_nchw]
    reds = [fi['reduction'] for fi in feature_info]
    for i, cfg in enumerate(fpn_config['nodes']):
        p = params['nodes'][i]
        target_red = cfg['reduction']
        res = []
        for off in cfg['inputs_offsets']:
            y = nodes[off]
            ratio = target_red / reds[off]
            rp = p['resample'].get(off)
            if ratio > 1:   # conv_after_downsample=True: pool, then conv (if any)
                y = _ref_maxpool2x2(y)
                if rp is not None:
                    y = _ref_pw(y, rp['w'], rp['b'])
            else:           # module order: conv (if any), then nearest upsample
                if rp is not None:
                    y = _ref_pw(y, rp['w'], rp['b'])
                if ratio < 1:
                    y = jnp.repeat(jnp.repeat(y, 2, axis=1), 2, axis=2)
            res.append(y)
        w = jax.nn.relu(p['edge_weights'])
        coef = w / (jnp.sum(w) + 1e-4)
        x = res[0] * coef[0]
        for j in range(1, len(res)):
            x = x + res[j] * coef[j]
        x = x * jax.nn.sigmoid(x)                       # Swish
        kern = p['dw'].reshape(3, 3, 1, fpn_channels)   # depthwise 3x3
        x = lax.conv_general_dilated(
            x, kern, window_strides=(1, 1), padding=((1, 1), (1, 1)),
            dimension_numbers=('NHWC', 'HWIO', 'NHWC'),
            feature_group_count=fpn_channels)
        x = _ref_pw(x, p['pw_w'], p['pw_b'])            # pointwise 1x1 + bias
        nodes.append(x)
        reds.append(target_red)
    return [jnp.transpose(n, (0, 3, 1, 2)) for n in nodes[-num_levels:]]


# ----------------------------------------------------------------------------
# main
# ----------------------------------------------------------------------------

if __name__ == "__main__":
    key = jax.random.PRNGKey(0)

    # fpn_channels=128 keeps every kernel store lane-dense (C == 128 lanes) and the
    # MXU contraction full-width.
    fpn_channels = 128
    feat_channels = [16, 32, 48, 64, 96]
    reductions = [8, 16, 32, 64, 128]
    feature_info = [{'num_chs': c, 'reduction': r}
                    for c, r in zip(feat_channels, reductions)]

    # 5 input levels, NCHW, batch=2, spatial 16, 8, 4, 2, 1 (implied image 128x128)
    xs = []
    for c, r in zip(feat_channels, reductions):
        key, sub = jax.random.split(key)
        s = 16 * reductions[0] // r
        xs.append(jax.random.normal(sub, (2, c, s, s), jnp.float32))

    key, pkey = jax.random.split(key)
    params = init_params(pkey, feature_info, FPN_CONFIG, fpn_channels)

    outs = bifpn_layer_forward(xs, params, feature_info, FPN_CONFIG,
                               fpn_channels, num_levels=5)
    outs = [jax.block_until_ready(o) for o in outs]

    # sanity check against a pure-JAX reference of the same forward
    refs = bifpn_layer_forward_ref(xs, params, feature_info, FPN_CONFIG,
                                   fpn_channels, num_levels=5)
    for o, r in zip(outs, refs):
        np.testing.assert_allclose(np.asarray(o), np.asarray(r), rtol=2e-2, atol=2e-2)

    print("KERNEL_OK")
</pallas_src>

<mosaic_0001>
module attributes {stable_mosaic.version = 11 : i64} {
  func.func @_fnode_kernel(%arg0: i32, %arg1: memref<2xf32, #tpu.memory_space<smem>>, %arg2: memref<1x4x64xf32, #tpu.memory_space<vmem>>, %arg3: memref<64x128xf32, #tpu.memory_space<vmem>>, %arg4: memref<1x128xf32, #tpu.memory_space<vmem>>, %arg5: memref<1x1x96xf32, #tpu.memory_space<vmem>>, %arg6: memref<96x128xf32, #tpu.memory_space<vmem>>, %arg7: memref<1x128xf32, #tpu.memory_space<vmem>>, %arg8: memref<4x1xf32, #tpu.memory_space<vmem>>, %arg9: memref<9x1x128xf32, #tpu.memory_space<vmem>>, %arg10: memref<128x128xf32, #tpu.memory_space<vmem>>, %arg11: memref<1x128xf32, #tpu.memory_space<vmem>>, %arg12: memref<1x4x128xf32, #tpu.memory_space<vmem>>, %arg13: memref<2x4x128xf32, #tpu.memory_space<vmem>>, %arg14: memref<4x128xf32, #tpu.memory_space<vmem>>) attributes {dimension_semantics = [#tpu.dimension_semantics<parallel>], iteration_bounds = array<i64: 2>, scalar_prefetch = 0 : i64, scratch_operands = 2 : i64, tpu.core_type = #tpu.core_type<tc>, window_params = [{transform_indices = @transform_0, window_bounds = array<i64: 2>}, {transform_indices = @transform_1, window_bounds = array<i64: 1, 4, 64>}, {pipeline_mode = #tpu.pipeline_mode<synchronous>, transform_indices = @transform_2, window_bounds = array<i64: 64, 128>}, {pipeline_mode = #tpu.pipeline_mode<synchronous>, transform_indices = @transform_3, window_bounds = array<i64: 1, 128>}, {transform_indices = @transform_4, window_bounds = array<i64: 1, 1, 96>}, {pipeline_mode = #tpu.pipeline_mode<synchronous>, transform_indices = @transform_5, window_bounds = array<i64: 96, 128>}, {pipeline_mode = #tpu.pipeline_mode<synchronous>, transform_indices = @transform_6, window_bounds = array<i64: 1, 128>}, {pipeline_mode = #tpu.pipeline_mode<synchronous>, transform_indices = @transform_7, window_bounds = array<i64: 4, 1>}, {pipeline_mode = #tpu.pipeline_mode<synchronous>, transform_indices = @transform_8, window_bounds = array<i64: 9, 1, 128>}, {pipeline_mode = #tpu.pipeline_mode<synchronous>, transform_indices = @transform_9, window_bounds = array<i64: 128, 128>}, {pipeline_mode = #tpu.pipeline_mode<synchronous>, transform_indices = @transform_10, window_bounds = array<i64: 1, 128>}, {transform_indices = @transform_11, window_bounds = array<i64: 1, 4, 128>}]} {
    %c0 = arith.constant 0 : index
    %0 = memref.load %arg1[%c0] : memref<2xf32, #tpu.memory_space<smem>>
    %cst = arith.constant 0.000000e+00 : f32
    %1 = arith.maximumf %0, %cst : f32
    %c1 = arith.constant 1 : index
    %2 = memref.load %arg1[%c1] : memref<2xf32, #tpu.memory_space<smem>>
    %cst_0 = arith.constant 0.000000e+00 : f32
    %3 = arith.maximumf %2, %cst_0 : f32
    %4 = arith.addf %1, %3 : f32
    %cst_1 = arith.constant 9.99999974E-5 : f32
    %5 = arith.addf %4, %cst_1 : f32
    %cst_2 = arith.constant 1.000000e+00 : f32
    %6 = arith.divf %cst_2, %5 : f32
    %7 = arith.mulf %1, %6 : f32
    %8 = arith.mulf %3, %6 : f32
    %c0_3 = arith.constant 0 : index
    %c0_4 = arith.constant 0 : index
    %c0_5 = arith.constant 0 : index
    %9 = vector.load %arg2[%c0_3, %c0_4, %c0_5] : memref<1x4x64xf32, #tpu.memory_space<vmem>>, vector<1x4x64xf32>
    %10 = vector.shape_cast %9 : vector<1x4x64xf32> to vector<4x64xf32>
    %c0_6 = arith.constant 0 : index
    %c0_7 = arith.constant 0 : index
    %11 = vector.load %arg3[%c0_6, %c0_7] : memref<64x128xf32, #tpu.memory_space<vmem>>, vector<64x128xf32>
    %cst_8 = arith.constant dense<0.000000e+00> : vector<4x128xf32>
    %12 = tpu.matmul %10, %11, %cst_8 {dimension_numbers = #tpu.dot_dimension_numbers<[1], [0], [0], [1], [0, 0, 1, 1], [], []>} : vector<4x64xf32>, vector<64x128xf32>, vector<4x128xf32> -> vector<4x128xf32>
    %c0_9 = arith.constant 0 : index
    %c0_10 = arith.constant 0 : index
    %13 = vector.load %arg4[%c0_9, %c0_10] : memref<1x128xf32, #tpu.memory_space<vmem>>, vector<1x128xf32>
    %14 = vector.broadcast %13 : vector<1x128xf32> to vector<4x128xf32>
    %15 = arith.addf %12, %14 : vector<4x128xf32>
    %16 = vector.broadcast %7 : f32 to vector<4x128xf32>
    %17 = arith.mulf %15, %16 : vector<4x128xf32>
    %c0_11 = arith.constant 0 : index
    %c0_12 = arith.constant 0 : index
    %c0_13 = arith.constant 0 : index
    %18 = vector.load %arg5[%c0_11, %c0_12, %c0_13] : memref<1x1x96xf32, #tpu.memory_space<vmem>>, vector<1x1x96xf32>
    %19 = vector.shape_cast %18 : vector<1x1x96xf32> to vector<1x96xf32>
    %c0_14 = arith.constant 0 : index
    %c0_15 = arith.constant 0 : index
    %20 = vector.load %arg6[%c0_14, %c0_15] : memref<96x128xf32, #tpu.memory_space<vmem>>, vector<96x128xf32>
    %cst_16 = arith.constant dense<0.000000e+00> : vector<1x128xf32>
    %21 = tpu.matmul %19, %20, %cst_16 {dimension_numbers = #tpu.dot_dimension_numbers<[1], [0], [0], [1], [0, 0, 1, 1], [], []>} : vector<1x96xf32>, vector<96x128xf32>, vector<1x128xf32> -> vector<1x128xf32>
    %c0_17 = arith.constant 0 : index
    %c0_18 = arith.constant 0 : index
    %22 = vector.load %arg7[%c0_17, %c0_18] : memref<1x128xf32, #tpu.memory_space<vmem>>, vector<1x128xf32>
    %23 = arith.addf %21, %22 : vector<1x128xf32>
    %c0_19 = arith.constant 0 : index
    %c0_20 = arith.constant 0 : index
    %24 = vector.load %arg8[%c0_19, %c0_20] : memref<4x1xf32, #tpu.memory_space<vmem>>, vector<4x1xf32>
    %cst_21 = arith.constant dense<0.000000e+00> : vector<4x128xf32>
    %25 = tpu.matmul %24, %23, %cst_21 {dimension_numbers = #tpu.dot_dimension_numbers<[1], [0], [0], [1], [0, 0, 1, 1], [], []>} : vector<4x1xf32>, vector<1x128xf32>, vector<4x128xf32> -> vector<4x128xf32>
    %26 = vector.broadcast %8 : f32 to vector<4x128xf32>
    %27 = arith.mulf %25, %26 : vector<4x128xf32>
    %28 = arith.addf %17, %27 : vector<4x128xf32>
    %cst_22 = arith.constant 0.000000e+00 : f32
    %29 = vector.broadcast %cst_22 : f32 to vector<2x1x128xf32>
    %c0_23 = arith.constant 0 : index
    %c0_24 = arith.constant 0 : index
    %c0_25 = arith.constant 0 : index
    %30 = vector.load %arg13[%c0_23, %c0_24, %c0_25] : memref<2x4x128xf32, #tpu.memory_space<vmem>>, vector<2x1x128xf32>
    tpu.vector_store %arg13[%c0_23, %c0_24, %c0_25], %29 {strides = array<i32>} : memref<2x4x128xf32, #tpu.memory_space<vmem>>, vector<2x1x128xf32>,
    %c0_26 = arith.constant 0 : index
    %c3 = arith.constant 3 : index
    %c0_27 = arith.constant 0 : index
    %31 = vector.load %arg13[%c0_26, %c3, %c0_27] : memref<2x4x128xf32, #tpu.memory_space<vmem>>, vector<2x1x128xf32>
    tpu.vector_store %arg13[%c0_26, %c3, %c0_27], %29 {strides = array<i32>} : memref<2x4x128xf32, #tpu.memory_space<vmem>>, vector<2x1x128xf32>,
    %32 = arith.negf %28 : vector<4x128xf32>
    %33 = math.exp %32 : vector<4x128xf32>
    %cst_28 = arith.constant 1.000000e+00 : f32
    %34 = vector.broadcast %cst_28 : f32 to vector<4x128xf32>
    %35 = arith.addf %34, %33 : vector<4x128xf32>
    %36 = arith.divf %34, %35 : vector<4x128xf32>
    %37 = arith.mulf %28, %36 : vector<4x128xf32>
    %38 = vector.extract_strided_slice %37 {offsets = [0, 0], sizes = [2, 128], strides = [1, 1]} : vector<4x128xf32> to vector<2x128xf32>
    %c0_29 = arith.constant 0 : index
    %c1_30 = arith.constant 1 : index
    %c0_31 = arith.constant 0 : index
    %39 = vector.load %arg13[%c0_29, %c1_30, %c0_31] : memref<2x4x128xf32, #tpu.memory_space<vmem>>, vector<1x2x128xf32>
    %40 = vector.shape_cast %39 : vector<1x2x128xf32> to vector<2x128xf32>
    %41 = vector.shape_cast %38 : vector<2x128xf32> to vector<1x2x128xf32>
    tpu.vector_store %arg13[%c0_29, %c1_30, %c0_31], %41 {strides = array<i32>} : memref<2x4x128xf32, #tpu.memory_space<vmem>>, vector<1x2x128xf32>,
    %42 = vector.extract_strided_slice %37 {offsets = [2, 0], sizes = [2, 128], strides = [1, 1]} : vector<4x128xf32> to vector<2x128xf32>
    %c1_32 = arith.constant 1 : index
    %c1_33 = arith.constant 1 : index
    %c0_34 = arith.constant 0 : index
    %43 = vector.load %arg13[%c1_32, %c1_33, %c0_34] : memref<2x4x128xf32, #tpu.memory_space<vmem>>, vector<1x2x128xf32>
    %44 = vector.shape_cast %43 : vector<1x2x128xf32> to vector<2x128xf32>
    %45 = vector.shape_cast %42 : vector<2x128xf32> to vector<1x2x128xf32>
    tpu.vector_store %arg13[%c1_32, %c1_33, %c0_34], %45 {strides = array<i32>} : memref<2x4x128xf32, #tpu.memory_space<vmem>>, vector<1x2x128xf32>,
    %c0_35 = arith.constant 0 : index
    %c0_36 = arith.constant 0 : index
    %c0_37 = arith.constant 0 : index
    %46 = vector.load %arg9[%c0_35, %c0_36, %c0_37] : memref<9x1x128xf32, #tpu.memory_space<vmem>>, vector<9x1x128xf32>
    %47 = vector.extract_strided_slice %46 {offsets = [0, 0, 0], sizes = [1, 1, 128], strides = [1, 1, 1]} : vector<9x1x128xf32> to vector<1x1x128xf32>
    %48 = vector.shape_cast %47 : vector<1x1x128xf32> to vector<1x128xf32>
    %49 = vector.extract_strided_slice %46 {offsets = [1, 0, 0], sizes = [1, 1, 128], strides = [1, 1, 1]} : vector<9x1x128xf32> to vector<1x1x128xf32>
    %50 = vector.shape_cast %49 : vector<1x1x128xf32> to vector<1x128xf32>
    %51 = vector.extract_strided_slice %46 {offsets = [2, 0, 0], sizes = [1, 1, 128], strides = [1, 1, 1]} : vector<9x1x128xf32> to vector<1x1x128xf32>
    %52 = vector.shape_cast %51 : vector<1x1x128xf32> to vector<1x128xf32>
    %53 = vector.extract_strided_slice %46 {offsets = [3, 0, 0], sizes = [1, 1, 128], strides = [1, 1, 1]} : vector<9x1x128xf32> to vector<1x1x128xf32>
    %54 = vector.shape_cast %53 : vector<1x1x128xf32> to vector<1x128xf32>
    %55 = vector.extract_strided_slice %46 {offsets = [4, 0, 0], sizes = [1, 1, 128], strides = [1, 1, 1]} : vector<9x1x128xf32> to vector<1x1x128xf32>
    %56 = vector.shape_cast %55 : vector<1x1x128xf32> to vector<1x128xf32>
    %57 = vector.extract_strided_slice %46 {offsets = [5, 0, 0], sizes = [1, 1, 128], strides = [1, 1, 1]} : vector<9x1x128xf32> to vector<1x1x128xf32>
    %58 = vector.shape_cast %57 : vector<1x1x128xf32> to vector<1x128xf32>
    %59 = vector.extract_strided_slice %46 {offsets = [6, 0, 0], sizes = [1, 1, 128], strides = [1, 1, 1]} : vector<9x1x128xf32> to vector<1x1x128xf32>
    %60 = vector.shape_cast %59 : vector<1x1x128xf32> to vector<1x128xf32>
    %61 = vector.extract_strided_slice %46 {offsets = [7, 0, 0], sizes = [1, 1, 128], strides = [1, 1, 1]} : vector<9x1x128xf32> to vector<1x1x128xf32>
    %62 = vector.shape_cast %61 : vector<1x1x128xf32> to vector<1x128xf32>
    %63 = vector.extract_strided_slice %46 {offsets = [8, 0, 0], sizes = [1, 1, 128], strides = [1, 1, 1]} : vector<9x1x128xf32> to vector<1x1x128xf32>
    %64 = vector.shape_cast %63 : vector<1x1x128xf32> to vector<1x128xf32>
    %c0_38 = arith.constant 0 : index
    %c0_39 = arith.constant 0 : index
    %c0_40 = arith.constant 0 : index
    %65 = vector.load %arg13[%c0_38, %c0_39, %c0_40] : memref<2x4x128xf32, #tpu.memory_space<vmem>>, vector<1x4x128xf32>
    %66 = vector.shape_cast %65 : vector<1x4x128xf32> to vector<4x128xf32>
    %67 = vector.extract_strided_slice %66 {offsets = [0, 0], sizes = [2, 128], strides = [1, 1]} : vector<4x128xf32> to vector<2x128xf32>
    %68 = vector.broadcast %54 : vector<1x128xf32> to vector<2x128xf32>
    %69 = arith.mulf %67, %68 : vector<2x128xf32>
    %70 = vector.extract_strided_slice %66 {offsets = [1, 0], sizes = [2, 128], strides = [1, 1]} : vector<4x128xf32> to vector<2x128xf32>
    %71 = vector.broadcast %56 : vector<1x128xf32> to vector<2x128xf32>
    %72 = arith.mulf %70, %71 : vector<2x128xf32>
    %73 = arith.addf %69, %72 : vector<2x128xf32>
    %74 = vector.extract_strided_slice %66 {offsets = [2, 0], sizes = [2, 128], strides = [1, 1]} : vector<4x128xf32> to vector<2x128xf32>
    %75 = vector.broadcast %58 : vector<1x128xf32> to vector<2x128xf32>
    %76 = arith.mulf %74, %75 : vector<2x128xf32>
    %77 = arith.addf %73, %76 : vector<2x128xf32>
    %c1_41 = arith.constant 1 : index
    %c0_42 = arith.constant 0 : index
    %c0_43 = arith.constant 0 : index
    %78 = vector.load %arg13[%c1_41, %c0_42, %c0_43] : memref<2x4x128xf32, #tpu.memory_space<vmem>>, vector<1x4x128xf32>
    %79 = vector.shape_cast %78 : vector<1x4x128xf32> to vector<4x128xf32>
    %80 = vector.extract_strided_slice %79 {offsets = [0, 0], sizes = [2, 128], strides = [1, 1]} : vector<4x128xf32> to vector<2x128xf32>
    %81 = vector.broadcast %60 : vector<1x128xf32> to vector<2x128xf32>
    %82 = arith.mulf %80, %81 : vector<2x128xf32>
    %83 = arith.addf %77, %82 : vector<2x128xf32>
    %84 = vector.extract_strided_slice %79 {offsets = [1, 0], sizes = [2, 128], strides = [1, 1]} : vector<4x128xf32> to vector<2x128xf32>
    %85 = vector.broadcast %62 : vector<1x128xf32> to vector<2x128xf32>
    %86 = arith.mulf %84, %85 : vector<2x128xf32>
    %87 = arith.addf %83, %86 : vector<2x128xf32>
    %88 = vector.extract_strided_slice %79 {offsets = [2, 0], sizes = [2, 128], strides = [1, 1]} : vector<4x128xf32> to vector<2x128xf32>
    %89 = vector.broadcast %64 : vector<1x128xf32> to vector<2x128xf32>
    %90 = arith.mulf %88, %89 : vector<2x128xf32>
    %91 = arith.addf %87, %90 : vector<2x128xf32>
    %c0_44 = arith.constant 0 : index
    %c0_45 = arith.constant 0 : index
    %92 = vector.load %arg14[%c0_44, %c0_45] : memref<4x128xf32, #tpu.memory_space<vmem>>, vector<2x128xf32>
    tpu.vector_store %arg14[%c0_44, %c0_45], %91 {strides = array<i32>} : memref<4x128xf32, #tpu.memory_space<vmem>>, vector<2x128xf32>,
    %c0_46 = arith.constant 0 : index
    %c0_47 = arith.constant 0 : index
    %c0_48 = arith.constant 0 : index
    %93 = vector.load %arg13[%c0_46, %c0_47, %c0_48] : memref<2x4x128xf32, #tpu.memory_space<vmem>>, vector<1x4x128xf32>
    %94 = vector.shape_cast %93 : vector<1x4x128xf32> to vector<4x128xf32>
    %95 = vector.extract_strided_slice %94 {offsets = [0, 0], sizes = [2, 128], strides = [1, 1]} : vector<4x128xf32> to vector<2x128xf32>
    %96 = vector.broadcast %48 : vector<1x128xf32> to vector<2x128xf32>
    %97 = arith.mulf %95, %96 : vector<2x128xf32>
    %98 = vector.extract_strided_slice %94 {offsets = [1, 0], sizes = [2, 128], strides = [1, 1]} : vector<4x128xf32> to vector<2x128xf32>
    %99 = vector.broadcast %50 : vector<1x128xf32> to vector<2x128xf32>
    %100 = arith.mulf %98, %99 : vector<2x128xf32>
    %101 = arith.addf %97, %100 : vector<2x128xf32>
    %102 = vector.extract_strided_slice %94 {offsets = [2, 0], sizes = [2, 128], strides = [1, 1]} : vector<4x128xf32> to vector<2x128xf32>
    %103 = vector.broadcast %52 : vector<1x128xf32> to vector<2x128xf32>
    %104 = arith.mulf %102, %103 : vector<2x128xf32>
    %105 = arith.addf %101, %104 : vector<2x128xf32>
    %c1_49 = arith.constant 1 : index
    %c0_50 = arith.constant 0 : index
    %c0_51 = arith.constant 0 : index
    %106 = vector.load %arg13[%c1_49, %c0_50, %c0_51] : memref<2x4x128xf32, #tpu.memory_space<vmem>>, vector<1x4x128xf32>
    %107 = vector.shape_cast %106 : vector<1x4x128xf32> to vector<4x128xf32>
    %108 = vector.extract_strided_slice %107 {offsets = [0, 0], sizes = [2, 128], strides = [1, 1]} : vector<4x128xf32> to vector<2x128xf32>
    %109 = vector.broadcast %54 : vector<1x128xf32> to vector<2x128xf32>
    %110 = arith.mulf %108, %109 : vector<2x128xf32>
    %111 = arith.addf %105, %110 : vector<2x128xf32>
    %112 = vector.extract_strided_slice %107 {offsets = [1, 0], sizes = [2, 128], strides = [1, 1]} : vector<4x128xf32> to vector<2x128xf32>
    %113 = vector.broadcast %56 : vector<1x128xf32> to vector<2x128xf32>
    %114 = arith.mulf %112, %113 : vector<2x128xf32>
    %115 = arith.addf %111, %114 : vector<2x128xf32>
    %116 = vector.extract_strided_slice %107 {offsets = [2, 0], sizes = [2, 128], strides = [1, 1]} : vector<4x128xf32> to vector<2x128xf32>
    %117 = vector.broadcast %58 : vector<1x128xf32> to vector<2x128xf32>
    %118 = arith.mulf %116, %117 : vector<2x128xf32>
    %119 = arith.addf %115, %118 : vector<2x128xf32>
    %c2 = arith.constant 2 : index
    %c0_52 = arith.constant 0 : index
    %120 = vector.load %arg14[%c2, %c0_52] : memref<4x128xf32, #tpu.memory_space<vmem>>, vector<2x128xf32>
    tpu.vector_store %arg14[%c2, %c0_52], %119 {strides = array<i32>} : memref<4x128xf32, #tpu.memory_space<vmem>>, vector<2x128xf32>,
    %c0_53 = arith.constant 0 : index
    %c0_54 = arith.constant 0 : index
    %121 = vector.load %arg14[%c0_53, %c0_54] : memref<4x128xf32, #tpu.memory_space<vmem>>, vector<4x128xf32>
    %c0_55 = arith.constant 0 : index
    %c0_56 = arith.constant 0 : index
    %122 = vector.load %arg10[%c0_55, %c0_56] : memref<128x128xf32, #tpu.memory_space<vmem>>, vector<128x128xf32>
    %cst_57 = arith.constant dense<0.000000e+00> : vector<4x128xf32>
    %123 = tpu.matmul %121, %122, %cst_57 {dimension_numbers = #tpu.dot_dimension_numbers<[1], [0], [0], [1], [0, 0, 1, 1], [], []>} : vector<4x128xf32>, vector<128x128xf32>, vector<4x128xf32> -> vector<4x128xf32>
    %c0_58 = arith.constant 0 : index
    %c0_59 = arith.constant 0 : index
    %124 = vector.load %arg11[%c0_58, %c0_59] : memref<1x128xf32, #tpu.memory_space<vmem>>, vector<1x128xf32>
    %125 = vector.broadcast %124 : vector<1x128xf32> to vector<4x128xf32>
    %126 = arith.addf %123, %125 : vector<4x128xf32>
    %c0_60 = arith.constant 0 : index
    %c0_61 = arith.constant 0 : index
    %c0_62 = arith.constant 0 : index
    %127 = vector.load %arg12[%c0_60, %c0_61, %c0_62] : memref<1x4x128xf32, #tpu.memory_space<vmem>>, vector<1x4x128xf32>
    %128 = vector.shape_cast %127 : vector<1x4x128xf32> to vector<4x128xf32>
    %129 = vector.shape_cast %126 : vector<4x128xf32> to vector<1x4x128xf32>
    tpu.vector_store %arg12[%c0_60, %c0_61, %c0_62], %129 {strides = array<i32>} : memref<1x4x128xf32, #tpu.memory_space<vmem>>, vector<1x4x128xf32>,
    return
  }
  func.func @transform_0(%arg0: i32) -> i32 {
    %c0_i32 = arith.constant 0 : i32
    %c0_i32_0 = arith.constant 0 : i32
    return %c0_i32 : i32
  }
  func.func @transform_1(%arg0: i32) -> (i32, i32, i32) {
    %c0_i32 = arith.constant 0 : i32
    %c0_i32_0 = arith.constant 0 : i32
    %c0_i32_1 = arith.constant 0 : i32
    return %arg0, %c0_i32, %c0_i32_0 : i32, i32, i32
  }
  func.func @transform_2(%arg0: i32) -> (i32, i32) {
    %c0_i32 = arith.constant 0 : i32
    %c0_i32_0 = arith.constant 0 : i32
    %c0_i32_1 = arith.constant 0 : i32
    return %c0_i32, %c0_i32_0 : i32, i32
  }
  func.func @transform_3(%arg0: i32) -> (i32, i32) {
    %c0_i32 = arith.constant 0 : i32
    %c0_i32_0 = arith.constant 0 : i32
    %c0_i32_1 = arith.constant 0 : i32
    return %c0_i32, %c0_i32_0 : i32, i32
  }
  func.func @transform_4(%arg0: i32) -> (i32, i32, i32) {
    %c0_i32 = arith.constant 0 : i32
    %c0_i32_0 = arith.constant 0 : i32
    %c0_i32_1 = arith.constant 0 : i32
    return %arg0, %c0_i32, %c0_i32_0 : i32, i32, i32
  }
  func.func @transform_5(%arg0: i32) -> (i32, i32) {
    %c0_i32 = arith.constant 0 : i32
    %c0_i32_0 = arith.constant 0 : i32
    %c0_i32_1 = arith.constant 0 : i32
    return %c0_i32, %c0_i32_0 : i32, i32
  }
  func.func @transform_6(%arg0: i32) -> (i32, i32) {
    %c0_i32 = arith.constant 0 : i32
    %c0_i32_0 = arith.constant 0 : i32
    %c0_i32_1 = arith.constant 0 : i32
    return %c0_i32, %c0_i32_0 : i32, i32
  }
  func.func @transform_7(%arg0: i32) -> (i32, i32) {
    %c0_i32 = arith.constant 0 : i32
    %c0_i32_0 = arith.constant 0 : i32
    %c0_i32_1 = arith.constant 0 : i32
    return %c0_i32, %c0_i32_0 : i32, i32
  }
  func.func @transform_8(%arg0: i32) -> (i32, i32, i32) {
    %c0_i32 = arith.constant 0 : i32
    %c0_i32_0 = arith.constant 0 : i32
    %c0_i32_1 = arith.constant 0 : i32
    %c0_i32_2 = arith.constant 0 : i32
    return %c0_i32, %c0_i32_0, %c0_i32_1 : i32, i32, i32
  }
  func.func @transform_9(%arg0: i32) -> (i32, i32) {
    %c0_i32 = arith.constant 0 : i32
    %c0_i32_0 = arith.constant 0 : i32
    %c0_i32_1 = arith.constant 0 : i32
    return %c0_i32, %c0_i32_0 : i32, i32
  }
  func.func @transform_10(%arg0: i32) -> (i32, i32) {
    %c0_i32 = arith.constant 0 : i32
    %c0_i32_0 = arith.constant 0 : i32
    %c0_i32_1 = arith.constant 0 : i32
    return %c0_i32, %c0_i32_0 : i32, i32
  }
  func.func @transform_11(%arg0: i32) -> (i32, i32, i32) {
    %c0_i32 = arith.constant 0 : i32
    %c0_i32_0 = arith.constant 0 : i32
    %c0_i32_1 = arith.constant 0 : i32
    return %arg0, %c0_i32, %c0_i32_0 : i32, i32, i32
  }
}

</mosaic_0001>

<llo_original>
// kernel: tpu_custom_call.1
$region0: #{tpu_custom_call.1}
  #allocation0 [shape = 'u32[]', space=smem, size = 0x4, offset = 0x4, fixed_abs, tag = 'smem constant byte address 0x4 - core index']
  #allocation1 [shape = 'u32[144,128]{1,0:T(1,128)}', space=vmem, size = 0x12000, scoped, tag = 'internal scratch']
  #allocation2 [shape = 'f32[2,4,128]{2,1,0:T(4,128)}', space=vmem, size = 0x1000, scoped, tag = 'scratch operand']
  #allocation3 [shape = 'f32[4,128]{1,0:T(4,128)}', space=vmem, size = 0x800, scoped, tag = 'scratch operand']
  %s0 = inlined_call_operand.vmem [shape: f32[2], index: 0, kind: input, shape index: {}]
  %s1 = inlined_call_operand.hbm [shape: f32[2,4,64], index: 1, kind: input, shape index: {}]
  %s2 = inlined_call_operand.hbm [shape: f32[64,128], index: 2, kind: input, shape index: {}]
  %s3 = inlined_call_operand.vmem [shape: f32[1,128], index: 3, kind: input, shape index: {}]
  %s4 = inlined_call_operand.vmem [shape: f32[2,1,96], index: 4, kind: input, shape index: {}]
  %s5 = inlined_call_operand.hbm [shape: f32[96,128], index: 5, kind: input, shape index: {}]
  %s6 = inlined_call_operand.vmem [shape: f32[1,128], index: 6, kind: input, shape index: {}]
  %s7 = inlined_call_operand.vmem [shape: f32[4,1], index: 7, kind: input, shape index: {}]
  %s8 = inlined_call_operand.vmem [shape: f32[9,1,128], index: 8, kind: input, shape index: {}]
  %s9 = inlined_call_operand.hbm [shape: f32[128,128], index: 9, kind: input, shape index: {}]
  %s10 = inlined_call_operand.vmem [shape: f32[1,128], index: 10, kind: input, shape index: {}]
  %s11 = inlined_call_operand.hbm [shape: f32[2,4,128], index: 11, kind: output, shape index: {}]
  %s12 = sld [smem:[#allocation0]]
  $region97: #{tpu_custom_call.1} parent=0
    _
  %s14 = ssub.s32 1, %s12
  %s15 = scalar_select 0, %s14, %s12
  $region1: #{tpu_custom_call.1} parent=0
    #allocation4 [shape = 'u8[512]{0}', space=smem, size = 0x200, scoped, tag = 'input window, operand 0, single buffered']
    #allocation5 [shape = 's32[2]{0}', space=sflag, size = 0x8, scoped, tag = 'scoped memory for tpu_custom_call.1']
    #allocation6 [shape = 's32[2]{0}', space=sflag, size = 0x8, scoped, tag = 'scoped memory for tpu_custom_call.1']
    #allocation7 [shape = 's32[2]{0}', space=sflag, size = 0x8, scoped, tag = 'scoped memory for tpu_custom_call.1']
    #allocation8 [shape = 'u8[4096]{0}', space=vmem, size = 0x1000, scoped, tag = 'input window, operand 1']
    #allocation9 [shape = 'u8[32768]{0}', space=vmem, size = 0x8000, scoped, tag = 'input window, operand 2, single buffered']
    #allocation10 [shape = 's32[1]{0}', space=sflag, size = 0x4, scoped, tag = 'scoped memory for tpu_custom_call.1']
    #allocation11 [shape = 'u8[49152]{0}', space=vmem, size = 0xc000, scoped, tag = 'input window, operand 5, single buffered']
    #allocation12 [shape = 'u8[65536]{0}', space=vmem, size = 0x10000, scoped, tag = 'input window, operand 9, single buffered']
    #allocation13 [shape = 's32[1]{0}', space=sflag, size = 0x4, scoped, tag = 'scoped memory for tpu_custom_call.1']
    #allocation14 [shape = 'u8[4096]{0}', space=vmem, size = 0x1000, scoped, tag = 'output window, operand 0']
    %16 = vsyncpa [#allocation7], 0
    %17 = vsyncpa [#allocation5], 0
    %s18 = scalar_lea.sflag [#allocation5], 1
    %19 = vsyncpa %s18, 0
    %20 = vsyncpa [#allocation10], 0
    %21 = vsyncpa [#allocation13], 0
    %22 = vsyncpa [#allocation6], 0
    %s23 = scalar_lea.sflag [#allocation6], 1
    %24 = vsyncpa %s23, 0
    loop: start=0, step=1, limit=4
    $region2: #{tpu_custom_call.1} parent=1 // loop_pre_header
      _
    $region3: #{tpu_custom_call.1} parent=1 // loop_header
      %s26 = sphi 0, %s30
      %p27 = scmp.ge.s32.totalorder %s26, 4
      %s34 = sphi 0, %s34
      %s36 = sphi 0, %s34
      %s37 = sphi 0, %s36
      %s51 = sphi 0, %s37
      %s57 = sphi 0, %s59
      %s60 = sphi 0, %s57
      %s61 = sphi 0, %s60
      %s77 = sphi 0, %s61
      %s81 = sphi 0, %s81
      %s83 = sphi 0, %s81
      %s84 = sphi 0, %s83
      %s98 = sphi 0, %s84
      %s102 = sphi 0, %s102
      %s104 = sphi 0, %s102
      %s105 = sphi 0, %s104
      %s119 = sphi 0, %s105
      %s125 = sphi 0, %s127
      %s128 = sphi 0, %s125
      %s129 = sphi 0, %s128
      %s145 = sphi 0, %s129
      %s149 = sphi 0, %s149
      %s151 = sphi 0, %s149
      %s152 = sphi 0, %s151
      %s166 = sphi 0, %s152
      %s170 = sphi 0, %s170
      %s172 = sphi 0, %s170
      %s173 = sphi 0, %s172
      %s187 = sphi 0, %s173
      %s191 = sphi 0, %s191
      %s193 = sphi 0, %s191
      %s194 = sphi 0, %s193
      %s208 = sphi 0, %s194
      %s212 = sphi 0, %s212
      %s214 = sphi 0, %s212
      %s215 = sphi 0, %s214
      %s229 = sphi 0, %s215
      %s233 = sphi 0, %s233
      %s235 = sphi 0, %s233
      %s236 = sphi 0, %s235
      %s250 = sphi 0, %s236
      %s254 = sphi 0, %s254
      %s256 = sphi 0, %s254
      %s257 = sphi 0, %s256
      %s271 = sphi 0, %s257
      %s277 = sphi 0, %s279
      %s280 = sphi 0, %s277
      %s281 = sphi 0, %s280
      %s297 = sphi 0, %s281
    $region4: #{tpu_custom_call.1} parent=1 // loop_header_branch
      %29 = sbr.rel (%p27) target = $region8
    $region5: #{tpu_custom_call.1} parent=1 // loop_body
      %s31 = ssub.s32 %s26, 1
      %s32 = ssub.s32 %s26, 2
      %s33 = sadd.s32 %s26, 1
      %s35 = sadd.s32 %s34, 1
      %p38 = scmp.eq.s32.totalorder %s26, 1
      %p39 = scmp.ne.s32.totalorder %s34, %s36
      %p40 = scmp.eq.s32.totalorder %s26, 0
      %p41 = por %p39, %p40
      %p42 = scmp.ne.s32.totalorder %s34, %s36
      %p43 = scmp.eq.s32.totalorder %s31, 1
      %p44 = por %p42, %p43
      %p45 = scmp.ne.s32.totalorder %s36, %s37
      %p46 = scmp.eq.s32.totalorder %s31, 0
      %p47 = por %p45, %p46
      %p48 = scmp.ne.s32.totalorder %s36, %s37
      %p49 = scmp.eq.s32.totalorder %s32, 1
      %p50 = por %p48, %p49
      %p52 = scmp.ne.s32.totalorder %s37, %s51
      %p53 = scmp.eq.s32.totalorder %s32, 0
      %p54 = por %p52, %p53
      %s55 = ssub.s32 %s26, %s33
      %p56 = scmp.eq.s32.totalorder %s55, 0
      %s58 = sadd.s32 %s57, 1
      %s59 = scalar_select %p56, %s57, %s58
      %p62 = pneg %p56
      %p63 = scmp.eq.s32.totalorder %s26, 1
      %p64 = por %p62, %p63
      %p65 = scmp.ne.s32.totalorder %s57, %s60
      %p66 = scmp.eq.s32.totalorder %s26, 0
      %p67 = por %p65, %p66
      %p68 = scmp.ne.s32.totalorder %s57, %s60
      %p69 = scmp.eq.s32.totalorder %s31, 1
      %p70 = por %p68, %p69
      %p71 = scmp.ne.s32.totalorder %s60, %s61
      %p72 = scmp.eq.s32.totalorder %s31, 0
      %p73 = por %p71, %p72
      %p74 = scmp.ne.s32.totalorder %s60, %s61
      %p75 = scmp.eq.s32.totalorder %s32, 1
      %p76 = por %p74, %p75
      %p78 = scmp.ne.s32.totalorder %s61, %s77
      %p79 = scmp.eq.s32.totalorder %s32, 0
      %p80 = por %p78, %p79
      %s82 = sadd.s32 %s81, 1
      %p85 = scmp.eq.s32.totalorder %s26, 1
      %p86 = scmp.ne.s32.totalorder %s81, %s83
      %p87 = scmp.eq.s32.totalorder %s26, 0
      %p88 = por %p86, %p87
      %p89 = scmp.ne.s32.totalorder %s81, %s83
      %p90 = scmp.eq.s32.totalorder %s31, 1
      %p91 = por %p89, %p90
      %p92 = scmp.ne.s32.totalorder %s83, %s84
      %p93 = scmp.eq.s32.totalorder %s31, 0
      %p94 = por %p92, %p93
      %p95 = scmp.ne.s32.totalorder %s83, %s84
      %p96 = scmp.eq.s32.totalorder %s32, 1
      %p97 = por %p95, %p96
      %p99 = scmp.ne.s32.totalorder %s84, %s98
      %p100 = scmp.eq.s32.totalorder %s32, 0
      %p101 = por %p99, %p100
      %s103 = sadd.s32 %s102, 1
      %p106 = scmp.eq.s32.totalorder %s26, 1
      %p107 = scmp.ne.s32.totalorder %s102, %s104
      %p108 = scmp.eq.s32.totalorder %s26, 0
      %p109 = por %p107, %p108
      %p110 = scmp.ne.s32.totalorder %s102, %s104
      %p111 = scmp.eq.s32.totalorder %s31, 1
      %p112 = por %p110, %p111
      %p113 = scmp.ne.s32.totalorder %s104, %s105
      %p114 = scmp.eq.s32.totalorder %s31, 0
      %p115 = por %p113, %p114
      %p116 = scmp.ne.s32.totalorder %s104, %s105
      %p117 = scmp.eq.s32.totalorder %s32, 1
      %p118 = por %p116, %p117
      %p120 = scmp.ne.s32.totalorder %s105, %s119
      %p121 = scmp.eq.s32.totalorder %s32, 0
      %p122 = por %p120, %p121
      %s123 = ssub.s32 %s26, %s33
      %p124 = scmp.eq.s32.totalorder %s123, 0
      %s126 = sadd.s32 %s125, 1
      %s127 = scalar_select %p124, %s125, %s126
      %p130 = pneg %p124
      %p131 = scmp.eq.s32.totalorder %s26, 1
      %p132 = por %p130, %p131
      %p133 = scmp.ne.s32.totalorder %s125, %s128
      %p134 = scmp.eq.s32.totalorder %s26, 0
      %p135 = por %p133, %p134
      %p136 = scmp.ne.s32.totalorder %s125, %s128
      %p137 = scmp.eq.s32.totalorder %s31, 1
      %p138 = por %p136, %p137
      %p139 = scmp.ne.s32.totalorder %s128, %s129
      %p140 = scmp.eq.s32.totalorder %s31, 0
      %p141 = por %p139, %p140
      %p142 = scmp.ne.s32.totalorder %s128, %s129
      %p143 = scmp.eq.s32.totalorder %s32, 1
      %p144 = por %p142, %p143
      %p146 = scmp.ne.s32.totalorder %s129, %s145
      %p147 = scmp.eq.s32.totalorder %s32, 0
      %p148 = por %p146, %p147
      %s150 = sadd.s32 %s149, 1
      %p153 = scmp.eq.s32.totalorder %s26, 1
      %p154 = scmp.ne.s32.totalorder %s149, %s151
      %p155 = scmp.eq.s32.totalorder %s26, 0
      %p156 = por %p154, %p155
      %p157 = scmp.ne.s32.totalorder %s149, %s151
      %p158 = scmp.eq.s32.totalorder %s31, 1
      %p159 = por %p157, %p158
      %p160 = scmp.ne.s32.totalorder %s151, %s152
      %p161 = scmp.eq.s32.totalorder %s31, 0
      %p162 = por %p160, %p161
      %p163 = scmp.ne.s32.totalorder %s151, %s152
      %p164 = scmp.eq.s32.totalorder %s32, 1
      %p165 = por %p163, %p164
      %p167 = scmp.ne.s32.totalorder %s152, %s166
      %p168 = scmp.eq.s32.totalorder %s32, 0
      %p169 = por %p167, %p168
      %s171 = sadd.s32 %s170, 1
      %p174 = scmp.eq.s32.totalorder %s26, 1
      %p175 = scmp.ne.s32.totalorder %s170, %s172
      %p176 = scmp.eq.s32.totalorder %s26, 0
      %p177 = por %p175, %p176
      %p178 = scmp.ne.s32.totalorder %s170, %s172
      %p179 = scmp.eq.s32.totalorder %s31, 1
      %p180 = por %p178, %p179
      %p181 = scmp.ne.s32.totalorder %s172, %s173
      %p182 = scmp.eq.s32.totalorder %s31, 0
      %p183 = por %p181, %p182
      %p184 = scmp.ne.s32.totalorder %s172, %s173
      %p185 = scmp.eq.s32.totalorder %s32, 1
      %p186 = por %p184, %p185
      %p188 = scmp.ne.s32.totalorder %s173, %s187
      %p189 = scmp.eq.s32.totalorder %s32, 0
      %p190 = por %p188, %p189
      %s192 = sadd.s32 %s191, 1
      %p195 = scmp.eq.s32.totalorder %s26, 1
      %p196 = scmp.ne.s32.totalorder %s191, %s193
      %p197 = scmp.eq.s32.totalorder %s26, 0
      %p198 = por %p196, %p197
      %p199 = scmp.ne.s32.totalorder %s191, %s193
      %p200 = scmp.eq.s32.totalorder %s31, 1
      %p201 = por %p199, %p200
      %p202 = scmp.ne.s32.totalorder %s193, %s194
      %p203 = scmp.eq.s32.totalorder %s31, 0
      %p204 = por %p202, %p203
      %p205 = scmp.ne.s32.totalorder %s193, %s194
      %p206 = scmp.eq.s32.totalorder %s32, 1
      %p207 = por %p205, %p206
      %p209 = scmp.ne.s32.totalorder %s194, %s208
      %p210 = scmp.eq.s32.totalorder %s32, 0
      %p211 = por %p209, %p210
      %s213 = sadd.s32 %s212, 1
      %p216 = scmp.eq.s32.totalorder %s26, 1
      %p217 = scmp.ne.s32.totalorder %s212, %s214
      %p218 = scmp.eq.s32.totalorder %s26, 0
      %p219 = por %p217, %p218
      %p220 = scmp.ne.s32.totalorder %s212, %s214
      %p221 = scmp.eq.s32.totalorder %s31, 1
      %p222 = por %p220, %p221
      %p223 = scmp.ne.s32.totalorder %s214, %s215
      %p224 = scmp.eq.s32.totalorder %s31, 0
      %p225 = por %p223, %p224
      %p226 = scmp.ne.s32.totalorder %s214, %s215
      %p227 = scmp.eq.s32.totalorder %s32, 1
      %p228 = por %p226, %p227
      %p230 = scmp.ne.s32.totalorder %s215, %s229
      %p231 = scmp.eq.s32.totalorder %s32, 0
      %p232 = por %p230, %p231
      %s234 = sadd.s32 %s233, 1
      %p237 = scmp.eq.s32.totalorder %s26, 1
      %p238 = scmp.ne.s32.totalorder %s233, %s235
      %p239 = scmp.eq.s32.totalorder %s26, 0
      %p240 = por %p238, %p239
      %p241 = scmp.ne.s32.totalorder %s233, %s235
      %p242 = scmp.eq.s32.totalorder %s31, 1
      %p243 = por %p241, %p242
      %p244 = scmp.ne.s32.totalorder %s235, %s236
      %p245 = scmp.eq.s32.totalorder %s31, 0
      %p246 = por %p244, %p245
      %p247 = scmp.ne.s32.totalorder %s235, %s236
      %p248 = scmp.eq.s32.totalorder %s32, 1
      %p249 = por %p247, %p248
      %p251 = scmp.ne.s32.totalorder %s236, %s250
      %p252 = scmp.eq.s32.totalorder %s32, 0
      %p253 = por %p251, %p252
      %s255 = sadd.s32 %s254, 1
      %p258 = scmp.eq.s32.totalorder %s26, 1
      %p259 = scmp.ne.s32.totalorder %s254, %s256
      %p260 = scmp.eq.s32.totalorder %s26, 0
      %p261 = por %p259, %p260
      %p262 = scmp.ne.s32.totalorder %s254, %s256
      %p263 = scmp.eq.s32.totalorder %s31, 1
      %p264 = por %p262, %p263
      %p265 = scmp.ne.s32.totalorder %s256, %s257
      %p266 = scmp.eq.s32.totalorder %s31, 0
      %p267 = por %p265, %p266
      %p268 = scmp.ne.s32.totalorder %s256, %s257
      %p269 = scmp.eq.s32.totalorder %s32, 1
      %p270 = por %p268, %p269
      %p272 = scmp.ne.s32.totalorder %s257, %s271
      %p273 = scmp.eq.s32.totalorder %s32, 0
      %p274 = por %p272, %p273
      %s275 = ssub.s32 %s26, %s33
      %p276 = scmp.eq.s32.totalorder %s275, 0
      %s278 = sadd.s32 %s277, 1
      %s279 = scalar_select %p276, %s277, %s278
      %p282 = pneg %p276
      %p283 = scmp.eq.s32.totalorder %s26, 1
      %p284 = por %p282, %p283
      %p285 = scmp.ne.s32.totalorder %s277, %s280
      %p286 = scmp.eq.s32.totalorder %s26, 0
      %p287 = por %p285, %p286
      %p288 = scmp.ne.s32.totalorder %s277, %s280
      %p289 = scmp.eq.s32.totalorder %s31, 1
      %p290 = por %p288, %p289
      %p291 = scmp.ne.s32.totalorder %s280, %s281
      %p292 = scmp.eq.s32.totalorder %s31, 0
      %p293 = por %p291, %p292
      %p294 = scmp.ne.s32.totalorder %s280, %s281
      %p295 = scmp.eq.s32.totalorder %s32, 1
      %p296 = por %p294, %p295
      %p298 = scmp.ne.s32.totalorder %s281, %s297
      %p299 = scmp.eq.s32.totalorder %s32, 0
      %p300 = por %p298, %p299
      %p301 = scmp.le.s32.totalorder 1, %s26
      %p302 = scmp.lt.s32.totalorder %s26, 3
      %p303 = pnand %p301, %p302
      %p304 = pneg %p303
      // Predicated region
      $region9: #{tpu_custom_call.1} parent=5 // pred_check
        _
      $region10: #{tpu_custom_call.1} parent=5 // pred_check_branch
        %306 = sbr.rel (%p303) target = $region12
      $region11: #{tpu_custom_call.1} parent=5 // pred_region
        %s307 = ssub.s32 %s26, 1
        // Predicated region
        $region13: #{tpu_custom_call.1} parent=11 // pred_check
          %p308 = pneg %p47
        $region14: #{tpu_custom_call.1} parent=11 // pred_check_branch
          %310 = sbr.rel (%p308) target = $region16
        $region15: #{tpu_custom_call.1} parent=11 // pred_region
          %s312 = ssub.s32 16, 16
          %313 = vsyncadd [#allocation7], %s312
          %s315 = sshll.u32 %s0, 4
          %s316 = int_to_ptr.vmem [resolvable:$true] %s315
          %318 = dma.vmem_to_smem %s316, 16, [#allocation4], [#allocation7]
        $region16: #{tpu_custom_call.1} parent=11 // pred_fallthru
          _
        // Predicated region
        $region17: #{tpu_custom_call.1} parent=11 // pred_check
          %p319 = pneg %p94
        $region18: #{tpu_custom_call.1} parent=11 // pred_check_branch
          %321 = sbr.rel (%p319) target = $region20
        $region19: #{tpu_custom_call.1} parent=11 // pred_region
          %s323 = ssub.s32 1024, 1024
          %324 = vsyncadd [#allocation10], %s323
          %s325 = sshll.u32 [#allocation9], 4
          %s326 = int_to_ptr.vmem [resolvable:$true] %s325
          %331 = dma.hbm_to_vmem [thread:$0]  %s2, 1024, %s326, [#allocation10], 128, 128, 8
        $region20: #{tpu_custom_call.1} parent=11 // pred_fallthru
          _
        // Predicated region
        $region21: #{tpu_custom_call.1} parent=11 // pred_check
          %p332 = pneg %p115
        $region22: #{tpu_custom_call.1} parent=11 // pred_check_branch
          %334 = sbr.rel (%p332) target = $region24
        $region23: #{tpu_custom_call.1} parent=11 // pred_region
          _
        $region24: #{tpu_custom_call.1} parent=11 // pred_fallthru
          _
        // Predicated region
        $region25: #{tpu_custom_call.1} parent=11 // pred_check
          %p335 = pneg %p162
        $region26: #{tpu_custom_call.1} parent=11 // pred_check_branch
          %337 = sbr.rel (%p335) target = $region28
        $region27: #{tpu_custom_call.1} parent=11 // pred_region
          %s339 = ssub.s32 1536, 1536
          %340 = vsyncadd [#allocation10], %s339
          %s341 = sshll.u32 [#allocation11], 4
          %s342 = int_to_ptr.vmem [resolvable:$true] %s341
          %347 = dma.hbm_to_vmem [thread:$0]  %s5, 1536, %s342, [#allocation10], 128, 128, 8
        $region28: #{tpu_custom_call.1} parent=11 // pred_fallthru
          _
        // Predicated region
        $region29: #{tpu_custom_call.1} parent=11 // pred_check
          %p348 = pneg %p183
        $region30: #{tpu_custom_call.1} parent=11 // pred_check_branch
          %350 = sbr.rel (%p348) target = $region32
        $region31: #{tpu_custom_call.1} parent=11 // pred_region
          _
        $region32: #{tpu_custom_call.1} parent=11 // pred_fallthru
          _
        // Predicated region
        $region33: #{tpu_custom_call.1} parent=11 // pred_check
          %p351 = pneg %p204
        $region34: #{tpu_custom_call.1} parent=11 // pred_check_branch
          %353 = sbr.rel (%p351) target = $region36
        $region35: #{tpu_custom_call.1} parent=11 // pred_region
          _
        $region36: #{tpu_custom_call.1} parent=11 // pred_fallthru
          _
        // Predicated region
        $region37: #{tpu_custom_call.1} parent=11 // pred_check
          %p354 = pneg %p225
        $region38: #{tpu_custom_call.1} parent=11 // pred_check_branch
          %356 = sbr.rel (%p354) target = $region40
        $region39: #{tpu_custom_call.1} parent=11 // pred_region
          _
        $region40: #{tpu_custom_call.1} parent=11 // pred_fallthru
          _
        // Predicated region
        $region41: #{tpu_custom_call.1} parent=11 // pred_check
          %p357 = pneg %p246
        $region42: #{tpu_custom_call.1} parent=11 // pred_check_branch
          %359 = sbr.rel (%p357) target = $region44
        $region43: #{tpu_custom_call.1} parent=11 // pred_region
          %s361 = ssub.s32 2048, 2048
          %362 = vsyncadd [#allocation13], %s361
          %s363 = sshll.u32 [#allocation12], 4
          %s364 = int_to_ptr.vmem [resolvable:$true] %s363
          %369 = dma.hbm_to_vmem [thread:$0]  %s9, 2048, %s364, [#allocation13], 128, 128, 8
        $region44: #{tpu_custom_call.1} parent=11 // pred_fallthru
          _
        // Predicated region
        $region45: #{tpu_custom_call.1} parent=11 // pred_check
          %p370 = pneg %p267
        $region46: #{tpu_custom_call.1} parent=11 // pred_check_branch
          %372 = sbr.rel (%p370) target = $region48
        $region47: #{tpu_custom_call.1} parent=11 // pred_region
          _
        $region48: #{tpu_custom_call.1} parent=11 // pred_fallthru
          _
      $region12: #{tpu_custom_call.1} parent=5 // pred_fallthru
        _
      %p373 = scmp.lt.s32.totalorder %s26, 2
      // Predicated region
      $region49: #{tpu_custom_call.1} parent=5 // pred_check
        %p374 = pneg %p373
      $region50: #{tpu_custom_call.1} parent=5 // pred_check_branch
        %376 = sbr.rel (%p374) target = $region52
      $region51: #{tpu_custom_call.1} parent=5 // pred_region
        // Predicated region
        $region53: #{tpu_custom_call.1} parent=51 // pred_check
          %p377 = pneg %p67
        $region54: #{tpu_custom_call.1} parent=51 // pred_check_branch
          %379 = sbr.rel (%p377) target = $region56
        $region55: #{tpu_custom_call.1} parent=51 // pred_region
          %s380 = sand.u32 %s57, 1
          %s381 = scalar_lea.sflag [#allocation5], %s380
          %s382 = sand.u32 %s57, 1
          %s383 = smul.addr %s382, 4
          %s384 = scalar_lea.vmem [#allocation8], %s383
          %s386 = ssub.s32 64, 64
          %387 = vsyncadd %s381, %s386
          %s388 = smul.addr %s26, 64
          %s389 = scalar_lea.hbm %s1, %s388
          %s391 = sshll.u32 %s384, 4
          %s392 = int_to_ptr.vmem [resolvable:$true] %s391
          %394 = dma.hbm_to_vmem [thread:$0]  %s389, 64, %s392, %s381
        $region56: #{tpu_custom_call.1} parent=51 // pred_fallthru
          _
        // Predicated region
        $region57: #{tpu_custom_call.1} parent=51 // pred_check
          %p395 = pneg %p135
        $region58: #{tpu_custom_call.1} parent=51 // pred_check_branch
          %397 = sbr.rel (%p395) target = $region60
        $region59: #{tpu_custom_call.1} parent=51 // pred_region
          %p398 = scmp.lt.s32.totalorder %s26, 1
          %s399 = scalar_select %p398, %s26, 1
          %s400 = scalar_lea.vmem %s4, %s399
        $region60: #{tpu_custom_call.1} parent=51 // pred_fallthru
          _
      $region52: #{tpu_custom_call.1} parent=5 // pred_fallthru
        _
      %p401 = scmp.le.s32.totalorder 1, %s26
      %p402 = scmp.lt.s32.totalorder %s26, 3
      %p403 = pnand %p401, %p402
      %p404 = pneg %p403
      // Predicated region
      $region61: #{tpu_custom_call.1} parent=5 // pred_check
        _
      $region62: #{tpu_custom_call.1} parent=5 // pred_check_branch
        %406 = sbr.rel (%p403) target = $region64
      $region63: #{tpu_custom_call.1} parent=5 // pred_region
        %s407 = ssub.s32 %s26, 1
        // Predicated region
        $region65: #{tpu_custom_call.1} parent=63 // pred_check
          %p408 = pneg %p47
        $region66: #{tpu_custom_call.1} parent=63 // pred_check_branch
          %410 = sbr.rel (%p408) target = $region68
        $region67: #{tpu_custom_call.1} parent=63 // pred_region
          %411 = dma.done [#allocation7], 16
        $region68: #{tpu_custom_call.1} parent=63 // pred_fallthru
          _
        %s412 = sand.u32 %s60, 1
        %s413 = scalar_lea.sflag [#allocation5], %s412
        %s414 = sand.u32 %s60, 1
        %s415 = smul.addr %s414, 4
        %s416 = scalar_lea.vmem [#allocation8], %s415
        // Predicated region
        $region69: #{tpu_custom_call.1} parent=63 // pred_check
          %p417 = pneg %p73
        $region70: #{tpu_custom_call.1} parent=63 // pred_check_branch
          %419 = sbr.rel (%p417) target = $region72
        $region71: #{tpu_custom_call.1} parent=63 // pred_region
          %420 = dma.done %s413, 64
        $region72: #{tpu_custom_call.1} parent=63 // pred_fallthru
          _
        // Predicated region
        $region73: #{tpu_custom_call.1} parent=63 // pred_check
          %p421 = pneg %p94
        $region74: #{tpu_custom_call.1} parent=63 // pred_check_branch
          %423 = sbr.rel (%p421) target = $region76
        $region75: #{tpu_custom_call.1} parent=63 // pred_region
          %424 = dma.done [#allocation10], 1024
        $region76: #{tpu_custom_call.1} parent=63 // pred_fallthru
          _
        // Predicated region
        $region77: #{tpu_custom_call.1} parent=63 // pred_check
          %p425 = pneg %p162
        $region78: #{tpu_custom_call.1} parent=63 // pred_check_branch
          %427 = sbr.rel (%p425) target = $region80
        $region79: #{tpu_custom_call.1} parent=63 // pred_region
          %428 = dma.done [#allocation10], 1536
        $region80: #{tpu_custom_call.1} parent=63 // pred_fallthru
          _
        // Predicated region
        $region81: #{tpu_custom_call.1} parent=63 // pred_check
          %p429 = pneg %p246
        $region82: #{tpu_custom_call.1} parent=63 // pred_check_branch
          %431 = sbr.rel (%p429) target = $region84
        $region83: #{tpu_custom_call.1} parent=63 // pred_region
          %432 = dma.done [#allocation13], 2048
        $region84: #{tpu_custom_call.1} parent=63 // pred_fallthru
          _
        %433 = sfence
        %p434 = pneg %p47
        %p435 = pneg %p44
        %s436 = sand.u32 %s60, 1
        %s437 = scalar_lea.sflag [#allocation5], %s436
        %s438 = sand.u32 %s60, 1
        %s439 = smul.addr %s438, 4
        %s440 = scalar_lea.vmem [#allocation8], %s439
        %p441 = pneg %p73
        %p442 = pneg %p70
        %p443 = pneg %p94
        %p444 = pneg %p91
        %p445 = pneg %p115
        %p446 = pneg %p112
        %p447 = scmp.lt.s32.totalorder %s31, 1
        %s448 = scalar_select %p447, %s31, 1
        %s449 = scalar_lea.vmem %s4, %s448
        %p450 = pneg %p141
        %p451 = pneg %p138
        %p452 = pneg %p162
        %p453 = pneg %p159
        %p454 = pneg %p183
        %p455 = pneg %p180
        %p456 = pneg %p204
        %p457 = pneg %p201
        %p458 = pneg %p225
        %p459 = pneg %p222
        %p460 = pneg %p246
        %p461 = pneg %p243
        %p462 = pneg %p267
        %p463 = pneg %p264
        %p464 = pneg %p293
        %p465 = pneg %p290
        %s466 = sand.u32 %s280, 1
        %s467 = scalar_lea.sflag [#allocation6], %s466
        %s468 = sand.u32 %s280, 1
        %s469 = smul.addr %s468, 4
        %s470 = scalar_lea.vmem [#allocation14], %s469
        %p471 = scmp.lt.s32.totalorder %s31, 1
        %s472 = scalar_select %p471, %s31, 1
        %s473 = scalar_lea.vmem %s4, %s472
        %s474 = sld [smem:[#allocation4]]
        %s475 = smax.f32 %s474, 0.0
        %s476 = sld [smem:[#allocation4 + $0x1]]
        %s477 = smax.f32 %s476, 0.0
        %s478 = sadd.f32 %s475, %s477
        %s479 = sadd.f32 %s478, 0.0001
        %v480 = vstv %s479
        %v481 = vrcp.pop %v480
        %s482 = vtos %v481
        %s483 = smul.f32 %s475, %s482
        %s484 = smul.f32 %s477, %s482
        %v485 = vld [vmem:[%s416] sm:$0xf]
        %v486 = vld [vmem:[#allocation9] sm:$0xff]
        %v487 = vld [vmem:[#allocation9 + $0x8] sm:$0xff]
        %v488 = vld [vmem:[#allocation9 + $0x10] sm:$0xff]
        %v489 = vld [vmem:[#allocation9 + $0x18] sm:$0xff]
        %v490 = vld [vmem:[#allocation9 + $0x20] sm:$0xff]
        %v491 = vld [vmem:[#allocation9 + $0x28] sm:$0xff]
        %v492 = vld [vmem:[#allocation9 + $0x30] sm:$0xff]
        %v493 = vld [vmem:[#allocation9 + $0x38] sm:$0xff]
        %v494 = vld [vmem:[%s3] sm:$0x1]
        %v496 = vlaneseq
        %v497 = vshrl.u32 %v496, 7
        %v498 = vsub.s32 0, %v497
        %v499 = vrot.slane %v494, %v498
        %vm501 = vcmask 523264
        %v503 = vsel %vm501, %v485, 0
        %505 = vmatprep.subr.mxu0 0.0
        %506 = vmatpush1.msra.mxu0 0.0
        %507 = vmatprep.subr.mxu0 0.0
        %508 = vmatpush1.msra.mxu0 0.0
        %509 = vmatprep.subr.mxu0 0.0
        %510 = vmatpush1.msra.mxu0 0.0
        %511 = vmatprep.subr.mxu0 0.0
        %512 = vmatpush1.msra.mxu0 0.0
        %513 = vmatprep.subr.mxu0 0.0
        %514 = vmatpush1.msra.mxu0 0.0
        %515 = vmatprep.subr.mxu0 0.0
        %516 = vmatpush1.msra.mxu0 0.0
        %517 = vmatprep.subr.mxu0 0.0
        %518 = vmatpush1.msra.mxu0 0.0
        %519 = vmatprep.subr.mxu0 0.0
        %520 = vmatpush1.msra.mxu0 0.0
        %521 = vmatprep.subr.mxu0 0.0
        %522 = vmatpush1.msra.mxu0 %v493
        %523 = vmatprep.subr.mxu0 0.0
        %524 = vmatpush1.msra.mxu0 %v492
        %525 = vmatprep.subr.mxu0 0.0
        %526 = vmatpush1.msra.mxu0 %v491
        %527 = vmatprep.subr.mxu0 0.0
        %528 = vmatpush1.msra.mxu0 %v490
        %529 = vmatprep.subr.mxu0 0.0
        %530 = vmatpush1.msra.mxu0 %v489
        %531 = vmatprep.subr.mxu0 0.0
        %532 = vmatpush1.msra.mxu0 %v488
        %533 = vmatprep.subr.mxu0 0.0
        %534 = vmatpush1.msra.mxu0 %v487
        %535 = vmatprep.subr.mxu0 0.0
        %536 = vmatpush1.msra.mxu0 %v486
        %537 = vmatprep.subr.mxu0 0.0
        %538 = vmatpush2.msra.mxu0 0.0
        %539 = vmatprep.subr.mxu0 0.0
        %540 = vmatpush2.msra.mxu0 0.0
        %541 = vmatprep.subr.mxu0 0.0
        %542 = vmatpush2.msra.mxu0 0.0
        %543 = vmatprep.subr.mxu0 0.0
        %544 = vmatpush2.msra.mxu0 0.0
        %545 = vmatprep.subr.mxu0 0.0
        %546 = vmatpush2.msra.mxu0 0.0
        %547 = vmatprep.subr.mxu0 0.0
        %548 = vmatpush2.msra.mxu0 0.0
        %549 = vmatprep.subr.mxu0 0.0
        %550 = vmatpush2.msra.mxu0 0.0
        %551 = vmatprep.subr.mxu0 0.0
        %552 = vmatpush2.msra.mxu0 0.0
        %553 = vmatprep.subr.mxu0 0.0
        %554 = vmatpush2.msra.mxu0 0.0
        %555 = vmatprep.subr.mxu0 0.0
        %556 = vmatpush2.msra.mxu0 0.0
        %557 = vmatprep.subr.mxu0 0.0
        %558 = vmatpush2.msra.mxu0 0.0
        %559 = vmatprep.subr.mxu0 0.0
        %560 = vmatpush2.msra.mxu0 0.0
        %561 = vmatprep.subr.mxu0 0.0
        %562 = vmatpush2.msra.mxu0 0.0
        %563 = vmatprep.subr.mxu0 0.0
        %564 = vmatpush2.msra.mxu0 0.0
        %565 = vmatprep.subr.mxu0 0.0
        %566 = vmatpush2.msra.mxu0 0.0
        %567 = vmatprep.subr.mxu0 0.0
        %568 = vmatpush2.msra.mxu0 0.0
        %569 = vmatprep.mubr.f32.mxu0 0.0
        %570 = vmatmul.mubr.f32.gmra.mxu0 %v503
        %v571 = vpop.f32.mrf.mxu0
        %v572 = vadd.f32 %v499, %v571
        %v573 = vpop.f32.mrf.mxu0
        %574 = vdwg.mxu0
        %v575 = vstv %s483
        %v576 = vmul.f32 %v572, %v575
        %v577 = vld [vmem:[%s473] sm:$0x1]
        %v578 = vld [vmem:[#allocation11] sm:$0xff]
        %v579 = vld [vmem:[#allocation11 + $0x8] sm:$0xff]
        %v580 = vld [vmem:[#allocation11 + $0x10] sm:$0xff]
        %v581 = vld [vmem:[#allocation11 + $0x18] sm:$0xff]
        %v582 = vld [vmem:[#allocation11 + $0x20] sm:$0xff]
        %v583 = vld [vmem:[#allocation11 + $0x28] sm:$0xff]
        %v584 = vld [vmem:[#allocation11 + $0x30] sm:$0xff]
        %v585 = vld [vmem:[#allocation11 + $0x38] sm:$0xff]
        %v586 = vld [vmem:[#allocation11 + $0x40] sm:$0xff]
        %v587 = vld [vmem:[#allocation11 + $0x48] sm:$0xff]
        %v588 = vld [vmem:[#allocation11 + $0x50] sm:$0xff]
        %v589 = vld [vmem:[#allocation11 + $0x58] sm:$0xff]
        %v590 = vld [vmem:[%s6] sm:$0x1]
        %vm591 = vcmask 785408
        %v593 = vsel %vm591, %v577, 0
        %595 = vmatprep.subr.mxu0 0.0
        %596 = vmatpush1.msra.mxu0 0.0
        %597 = vmatprep.subr.mxu0 0.0
        %598 = vmatpush1.msra.mxu0 0.0
        %599 = vmatprep.subr.mxu0 0.0
        %600 = vmatpush1.msra.mxu0 0.0
        %601 = vmatprep.subr.mxu0 0.0
        %602 = vmatpush1.msra.mxu0 0.0
        %603 = vmatprep.subr.mxu0 0.0
        %604 = vmatpush1.msra.mxu0 %v589
        %605 = vmatprep.subr.mxu0 0.0
        %606 = vmatpush1.msra.mxu0 %v588
        %607 = vmatprep.subr.mxu0 0.0
        %608 = vmatpush1.msra.mxu0 %v587
        %609 = vmatprep.subr.mxu0 0.0
        %610 = vmatpush1.msra.mxu0 %v586
        %611 = vmatprep.subr.mxu0 0.0
        %612 = vmatpush1.msra.mxu0 %v585
        %613 = vmatprep.subr.mxu0 0.0
        %614 = vmatpush1.msra.mxu0 %v584
        %615 = vmatprep.subr.mxu0 0.0
        %616 = vmatpush1.msra.mxu0 %v583
        %617 = vmatprep.subr.mxu0 0.0
        %618 = vmatpush1.msra.mxu0 %v582
        %619 = vmatprep.subr.mxu0 0.0
        %620 = vmatpush1.msra.mxu0 %v581
        %621 = vmatprep.subr.mxu0 0.0
        %622 = vmatpush1.msra.mxu0 %v580
        %623 = vmatprep.subr.mxu0 0.0
        %624 = vmatpush1.msra.mxu0 %v579
        %625 = vmatprep.subr.mxu0 0.0
        %626 = vmatpush1.msra.mxu0 %v578
        %627 = vmatprep.subr.mxu0 0.0
        %628 = vmatpush2.msra.mxu0 0.0
        %629 = vmatprep.subr.mxu0 0.0
        %630 = vmatpush2.msra.mxu0 0.0
        %631 = vmatprep.subr.mxu0 0.0
        %632 = vmatpush2.msra.mxu0 0.0
        %633 = vmatprep.subr.mxu0 0.0
        %634 = vmatpush2.msra.mxu0 0.0
        %635 = vmatprep.subr.mxu0 0.0
        %636 = vmatpush2.msra.mxu0 0.0
        %637 = vmatprep.subr.mxu0 0.0
        %638 = vmatpush2.msra.mxu0 0.0
        %639 = vmatprep.subr.mxu0 0.0
        %640 = vmatpush2.msra.mxu0 0.0
        %641 = vmatprep.subr.mxu0 0.0
        %642 = vmatpush2.msra.mxu0 0.0
        %643 = vmatprep.subr.mxu0 0.0
        %644 = vmatpush2.msra.mxu0 0.0
        %645 = vmatprep.subr.mxu0 0.0
        %646 = vmatpush2.msra.mxu0 0.0
        %647 = vmatprep.subr.mxu0 0.0
        %648 = vmatpush2.msra.mxu0 0.0
        %649 = vmatprep.subr.mxu0 0.0
        %650 = vmatpush2.msra.mxu0 0.0
        %651 = vmatprep.subr.mxu0 0.0
        %652 = vmatpush2.msra.mxu0 0.0
        %653 = vmatprep.subr.mxu0 0.0
        %654 = vmatpush2.msra.mxu0 0.0
        %655 = vmatprep.subr.mxu0 0.0
        %656 = vmatpush2.msra.mxu0 0.0
        %657 = vmatprep.subr.mxu0 0.0
        %658 = vmatpush2.msra.mxu0 0.0
        %659 = vmatprep.mubr.f32.mxu0 0.0
        %660 = vmatmul.mubr.f32.gmra.mxu0 %v593
        %v661 = vpop.f32.mrf.mxu0
        %v662 = vadd.f32 %v590, %v661
        %v663 = vpop.f32.mrf.mxu0
        %664 = vdwg.mxu0
        %v665 = vld [vmem:[%s7] sm:$0xf]
        %vm666 = vcmask 7168
        %v668 = vsel %vm666, %v665, 0
        %vm670 = vcmask 1040384
        %v672 = vsel %vm670, %v662, 0
        %674 = vmatprep.subr.mxu0 0.0
        %675 = vmatpush1.msra.mxu0 0.0
        %676 = vmatprep.subr.mxu0 0.0
        %677 = vmatpush1.msra.mxu0 0.0
        %678 = vmatprep.subr.mxu0 0.0
        %679 = vmatpush1.msra.mxu0 0.0
        %680 = vmatprep.subr.mxu0 0.0
        %681 = vmatpush1.msra.mxu0 0.0
        %682 = vmatprep.subr.mxu0 0.0
        %683 = vmatpush1.msra.mxu0 0.0
        %684 = vmatprep.subr.mxu0 0.0
        %685 = vmatpush1.msra.mxu0 0.0
        %686 = vmatprep.subr.mxu0 0.0
        %687 = vmatpush1.msra.mxu0 0.0
        %688 = vmatprep.subr.mxu0 0.0
        %689 = vmatpush1.msra.mxu0 0.0
        %690 = vmatprep.subr.mxu0 0.0
        %691 = vmatpush1.msra.mxu0 0.0
        %692 = vmatprep.subr.mxu0 0.0
        %693 = vmatpush1.msra.mxu0 0.0
        %694 = vmatprep.subr.mxu0 0.0
        %695 = vmatpush1.msra.mxu0 0.0
        %696 = vmatprep.subr.mxu0 0.0
        %697 = vmatpush1.msra.mxu0 0.0
        %698 = vmatprep.subr.mxu0 0.0
        %699 = vmatpush1.msra.mxu0 0.0
        %700 = vmatprep.subr.mxu0 0.0
        %701 = vmatpush1.msra.mxu0 0.0
        %702 = vmatprep.subr.mxu0 0.0
        %703 = vmatpush1.msra.mxu0 0.0
        %704 = vmatprep.subr.mxu0 0.0
        %705 = vmatpush1.msra.mxu0 %v672
        %706 = vmatprep.subr.mxu0 0.0
        %707 = vmatpush2.msra.mxu0 0.0
        %708 = vmatprep.subr.mxu0 0.0
        %709 = vmatpush2.msra.mxu0 0.0
        %710 = vmatprep.subr.mxu0 0.0
        %711 = vmatpush2.msra.mxu0 0.0
        %712 = vmatprep.subr.mxu0 0.0
        %713 = vmatpush2.msra.mxu0 0.0
        %714 = vmatprep.subr.mxu0 0.0
        %715 = vmatpush2.msra.mxu0 0.0
        %716 = vmatprep.subr.mxu0 0.0
        %717 = vmatpush2.msra.mxu0 0.0
        %718 = vmatprep.subr.mxu0 0.0
        %719 = vmatpush2.msra.mxu0 0.0
        %720 = vmatprep.subr.mxu0 0.0
        %721 = vmatpush2.msra.mxu0 0.0
        %722 = vmatprep.subr.mxu0 0.0
        %723 = vmatpush2.msra.mxu0 0.0
        %724 = vmatprep.subr.mxu0 0.0
        %725 = vmatpush2.msra.mxu0 0.0
        %726 = vmatprep.subr.mxu0 0.0
        %727 = vmatpush2.msra.mxu0 0.0
        %728 = vmatprep.subr.mxu0 0.0
        %729 = vmatpush2.msra.mxu0 0.0
        %730 = vmatprep.subr.mxu0 0.0
        %731 = vmatpush2.msra.mxu0 0.0
        %732 = vmatprep.subr.mxu0 0.0
        %733 = vmatpush2.msra.mxu0 0.0
        %734 = vmatprep.subr.mxu0 0.0
        %735 = vmatpush2.msra.mxu0 0.0
        %736 = vmatprep.subr.mxu0 0.0
        %737 = vmatpush2.msra.mxu0 0.0
        %738 = vmatprep.mubr.f32.mxu0 0.0
        %739 = vmatmul.mubr.f32.gmra.mxu0 %v668
        %v740 = vpop.f32.mrf.mxu0
        %v741 = vadd.f32 0.0, %v740
        %v742 = vpop.f32.mrf.mxu0
        %743 = vdwg.mxu0
        %v744 = vstv %s484
        %v745 = vmul.f32 %v741, %v744
        %v746 = vadd.f32 %v576, %v745
        %747 = vst [vmem:[#allocation2] sm:$0x1] 0.0
        %748 = vst [vmem:[#allocation2 + $0x4] sm:$0x1] 0.0
        %749 = vst [vmem:[#allocation2 + $0x3] sm:$0x1] 0.0
        %750 = vst [vmem:[#allocation2 + $0x7] sm:$0x1] 0.0
        %v751 = vxor.u32 %v746, 2147483648
        %v752 = vmul.f32 %v751, 1.442695
        %v753 = vpow.pop %v752
        %v754 = vadd.f32 %v753, 1.0
        %v755 = vrcp.pop %v754
        %v756 = vmul.f32 1.0, %v755
        %v757 = vmul.f32 %v746, %v756
        %758 = vst [vmem:[#allocation2 + $0x1] sm:$0x3] %v757
        %s759 = scalar_lea.vmem [#allocation2], 4
        %760 = vst [vmem:[%s759 - $0x1] sm:$0xc] %v757
        %v761 = vld [vmem:[%s8] sm:$0x1]
        %v762 = vld [vmem:[%s8 + $0x1] sm:$0x1]
        %v763 = vld [vmem:[%s8 + $0x2] sm:$0x1]
        %v764 = vld [vmem:[%s8 + $0x3] sm:$0x1]
        %v765 = vld [vmem:[%s8 + $0x4] sm:$0x1]
        %v766 = vld [vmem:[%s8 + $0x5] sm:$0x1]
        %v767 = vld [vmem:[%s8 + $0x6] sm:$0x1]
        %v768 = vld [vmem:[%s8 + $0x7] sm:$0x1]
        %v769 = vld [vmem:[%s8 + $0x8] sm:$0x1]
        %v770 = vld [vmem:[#allocation2] sm:$0xf]
        %v772 = vlaneseq
        %v773 = vshrl.u32 %v772, 7
        %v774 = vsub.s32 0, %v773
        %v775 = vrot.slane %v764, %v774
        %v777 = vmul.f32 %v770, %v775
        %v779 = vlaneseq
        %v780 = vshrl.u32 %v779, 7
        %v781 = vsub.s32 0, %v780
        %v782 = vrot.slane %v765, %v781
        %v784 = vmul.f32 %v770, %v782
        %v786 = vrot.slane %v784, 1
        %v788 = vadd.f32 %v777, %v786
        %v790 = vlaneseq
        %v791 = vshrl.u32 %v790, 7
        %v792 = vsub.s32 0, %v791
        %v793 = vrot.slane %v766, %v792
        %v795 = vmul.f32 %v770, %v793
        %v797 = vrot.slane %v795, 2
        %v799 = vadd.f32 %v788, %v797
        %v800 = vld [vmem:[%s759] sm:$0xf]
        %v802 = vlaneseq
        %v803 = vshrl.u32 %v802, 7
        %v804 = vsub.s32 0, %v803
        %v805 = vrot.slane %v767, %v804
        %v807 = vmul.f32 %v800, %v805
        %v808 = vadd.f32 %v799, %v807
        %v810 = vlaneseq
        %v811 = vshrl.u32 %v810, 7
        %v812 = vsub.s32 0, %v811
        %v813 = vrot.slane %v768, %v812
        %v815 = vmul.f32 %v800, %v813
        %v817 = vrot.slane %v815, 1
        %v819 = vadd.f32 %v808, %v817
        %v821 = vlaneseq
        %v822 = vshrl.u32 %v821, 7
        %v823 = vsub.s32 0, %v822
        %v824 = vrot.slane %v769, %v823
        %v826 = vmul.f32 %v800, %v824
        %v828 = vrot.slane %v826, 2
        %v830 = vadd.f32 %v819, %v828
        %831 = vst [vmem:[#allocation3] sm:$0x3] %v830
        %v832 = vld [vmem:[#allocation2] sm:$0xf]
        %v834 = vlaneseq
        %v835 = vshrl.u32 %v834, 7
        %v836 = vsub.s32 0, %v835
        %v837 = vrot.slane %v761, %v836
        %v839 = vmul.f32 %v832, %v837
        %v841 = vlaneseq
        %v842 = vshrl.u32 %v841, 7
        %v843 = vsub.s32 0, %v842
        %v844 = vrot.slane %v762, %v843
        %v846 = vmul.f32 %v832, %v844
        %v848 = vrot.slane %v846, 1
        %v850 = vadd.f32 %v839, %v848
        %v852 = vlaneseq
        %v853 = vshrl.u32 %v852, 7
        %v854 = vsub.s32 0, %v853
        %v855 = vrot.slane %v763, %v854
        %v857 = vmul.f32 %v832, %v855
        %v859 = vrot.slane %v857, 2
        %v861 = vadd.f32 %v850, %v859
        %v862 = vld [vmem:[%s759] sm:$0xf]
        %v863 = vmul.f32 %v862, %v775
        %v864 = vadd.f32 %v861, %v863
        %v865 = vmul.f32 %v862, %v782
        %v867 = vrot.slane %v865, 1
        %v869 = vadd.f32 %v864, %v867
        %v870 = vmul.f32 %v862, %v793
        %v872 = vrot.slane %v870, 2
        %v874 = vadd.f32 %v869, %v872
        %875 = vst [vmem:[#allocation3 + $0x2] sm:$0x3] %v874
        %v876 = vld [vmem:[#allocation3] sm:$0xf]
        %v877 = vld [vmem:[#allocation12] sm:$0xff]
        %v878 = vld [vmem:[#allocation12 + $0x8] sm:$0xff]
        %v879 = vld [vmem:[#allocation12 + $0x10] sm:$0xff]
        %v880 = vld [vmem:[#allocation12 + $0x18] sm:$0xff]
        %v881 = vld [vmem:[#allocation12 + $0x20] sm:$0xff]
        %v882 = vld [vmem:[#allocation12 + $0x28] sm:$0xff]
        %v883 = vld [vmem:[#allocation12 + $0x30] sm:$0xff]
        %v884 = vld [vmem:[#allocation12 + $0x38] sm:$0xff]
        %v885 = vld [vmem:[#allocation12 + $0x40] sm:$0xff]
        %v886 = vld [vmem:[#allocation12 + $0x48] sm:$0xff]
        %v887 = vld [vmem:[#allocation12 + $0x50] sm:$0xff]
        %v888 = vld [vmem:[#allocation12 + $0x58] sm:$0xff]
        %v889 = vld [vmem:[#allocation12 + $0x60] sm:$0xff]
        %v890 = vld [vmem:[#allocation12 + $0x68] sm:$0xff]
        %v891 = vld [vmem:[#allocation12 + $0x70] sm:$0xff]
        %v892 = vld [vmem:[#allocation12 + $0x78] sm:$0xff]
        %v893 = vld [vmem:[%s10] sm:$0x1]
        %v895 = vlaneseq
        %v896 = vshrl.u32 %v895, 7
        %v897 = vsub.s32 0, %v896
        %v898 = vrot.slane %v893, %v897
        %900 = vmatprep.subr.mxu0 0.0
        %901 = vmatpush1.msra.mxu0 %v892
        %902 = vmatprep.subr.mxu0 0.0
        %903 = vmatpush1.msra.mxu0 %v891
        %904 = vmatprep.subr.mxu0 0.0
        %905 = vmatpush1.msra.mxu0 %v890
        %906 = vmatprep.subr.mxu0 0.0
        %907 = vmatpush1.msra.mxu0 %v889
        %908 = vmatprep.subr.mxu0 0.0
        %909 = vmatpush1.msra.mxu0 %v888
        %910 = vmatprep.subr.mxu0 0.0
        %911 = vmatpush1.msra.mxu0 %v887
        %912 = vmatprep.subr.mxu0 0.0
        %913 = vmatpush1.msra.mxu0 %v886
        %914 = vmatprep.subr.mxu0 0.0
        %915 = vmatpush1.msra.mxu0 %v885
        %916 = vmatprep.subr.mxu0 0.0
        %917 = vmatpush1.msra.mxu0 %v884
        %918 = vmatprep.subr.mxu0 0.0
        %919 = vmatpush1.msra.mxu0 %v883
        %920 = vmatprep.subr.mxu0 0.0
        %921 = vmatpush1.msra.mxu0 %v882
        %922 = vmatprep.subr.mxu0 0.0
        %923 = vmatpush1.msra.mxu0 %v881
        %924 = vmatprep.subr.mxu0 0.0
        %925 = vmatpush1.msra.mxu0 %v880
        %926 = vmatprep.subr.mxu0 0.0
        %927 = vmatpush1.msra.mxu0 %v879
        %928 = vmatprep.subr.mxu0 0.0
        %929 = vmatpush1.msra.mxu0 %v878
        %930 = vmatprep.subr.mxu0 0.0
        %931 = vmatpush1.msra.mxu0 %v877
        %932 = vmatprep.subr.mxu0 0.0
        %933 = vmatpush2.msra.mxu0 0.0
        %934 = vmatprep.subr.mxu0 0.0
        %935 = vmatpush2.msra.mxu0 0.0
        %936 = vmatprep.subr.mxu0 0.0
        %937 = vmatpush2.msra.mxu0 0.0
        %938 = vmatprep.subr.mxu0 0.0
        %939 = vmatpush2.msra.mxu0 0.0
        %940 = vmatprep.subr.mxu0 0.0
        %941 = vmatpush2.msra.mxu0 0.0
        %942 = vmatprep.subr.mxu0 0.0
        %943 = vmatpush2.msra.mxu0 0.0
        %944 = vmatprep.subr.mxu0 0.0
        %945 = vmatpush2.msra.mxu0 0.0
        %946 = vmatprep.subr.mxu0 0.0
        %947 = vmatpush2.msra.mxu0 0.0
        %948 = vmatprep.subr.mxu0 0.0
        %949 = vmatpush2.msra.mxu0 0.0
        %950 = vmatprep.subr.mxu0 0.0
        %951 = vmatpush2.msra.mxu0 0.0
        %952 = vmatprep.subr.mxu0 0.0
        %953 = vmatpush2.msra.mxu0 0.0
        %954 = vmatprep.subr.mxu0 0.0
        %955 = vmatpush2.msra.mxu0 0.0
        %956 = vmatprep.subr.mxu0 0.0
        %957 = vmatpush2.msra.mxu0 0.0
        %958 = vmatprep.subr.mxu0 0.0
        %959 = vmatpush2.msra.mxu0 0.0
        %960 = vmatprep.subr.mxu0 0.0
        %961 = vmatpush2.msra.mxu0 0.0
        %962 = vmatprep.subr.mxu0 0.0
        %963 = vmatpush2.msra.mxu0 0.0
        %964 = vmatprep.mubr.f32.mxu0 0.0
        %965 = vmatmul.mubr.f32.gmra.mxu0 %v876
        %v966 = vpop.f32.mrf.mxu0
        %v967 = vadd.f32 %v898, %v966
        %v968 = vpop.f32.mrf.mxu0
        %969 = vdwg.mxu0
        %970 = vst [vmem:[%s470] sm:$0xf] %v967
        %s971 = sand.u32 %s280, 1
        %s972 = scalar_lea.sflag [#allocation6], %s971
        %s973 = sand.u32 %s280, 1
        %s974 = smul.addr %s973, 4
        %s975 = scalar_lea.vmem [#allocation14], %s974
        // Predicated region
        $region85: #{tpu_custom_call.1} parent=63 // pred_check
          %p976 = pneg %p290
        $region86: #{tpu_custom_call.1} parent=63 // pred_check_branch
          %978 = sbr.rel (%p976) target = $region88
        $region87: #{tpu_custom_call.1} parent=63 // pred_region
          %s980 = ssub.s32 64, 64
          %981 = vsyncadd %s972, %s980
          %s982 = smul.addr %s31, 64
          %s983 = scalar_lea.hbm %s11, %s982
          %s985 = sshll.u32 %s975, 4
          %s986 = int_to_ptr.vmem [resolvable:$true] %s985
          %988 = dma.vmem_to_hbm [thread:$0]  %s986, 64, %s983, %s972
        $region88: #{tpu_custom_call.1} parent=63 // pred_fallthru
          _
      $region64: #{tpu_custom_call.1} parent=5 // pred_fallthru
        _
      %p989 = scmp.le.s32.totalorder 2, %s26
      // Predicated region
      $region89: #{tpu_custom_call.1} parent=5 // pred_check
        %p990 = pneg %p989
      $region90: #{tpu_custom_call.1} parent=5 // pred_check_branch
        %992 = sbr.rel (%p990) target = $region92
      $region91: #{tpu_custom_call.1} parent=5 // pred_region
        %s993 = ssub.s32 %s26, 2
        // Predicated region
        $region93: #{tpu_custom_call.1} parent=91 // pred_check
          %p994 = pneg %p296
        $region94: #{tpu_custom_call.1} parent=91 // pred_check_branch
          %996 = sbr.rel (%p994) target = $region96
        $region95: #{tpu_custom_call.1} parent=91 // pred_region
          %s997 = sand.u32 %s281, 1
          %s998 = scalar_lea.sflag [#allocation6], %s997
          %s999 = sand.u32 %s281, 1
          %s1000 = smul.addr %s999, 4
          %s1001 = scalar_lea.vmem [#allocation14], %s1000
          %1002 = dma.done %s998, 64
        $region96: #{tpu_custom_call.1} parent=91 // pred_fallthru
          _
      $region92: #{tpu_custom_call.1} parent=5 // pred_fallthru
        _
    $region6: #{tpu_custom_call.1} parent=1 // loop_footer
      %s30 = sadd.s32 1, %s26
    $region7: #{tpu_custom_call.1} parent=1 // loop_footer_branch
      %25 = sbr.rel target = $region3
    $region8: #{tpu_custom_call.1} parent=1 // loop_exit
      _
    %1003 = vsyncpa [#allocation5], 1
    %s1004 = scalar_lea.sflag [#allocation5], 1
    %1005 = vsyncpa %s1004, 1
    %1006 = vsyncpa [#allocation10], 1
    %1007 = vsyncpa [#allocation13], 1
    %1008 = vsyncpa [#allocation6], 1
    %s1009 = scalar_lea.sflag [#allocation6], 1
    %1010 = vsyncpa %s1009, 1
    %1011 = vsyncpa [#allocation7], 1
    %s1012 = scalar_lea.sflag [#allocation7], 1
    %1013 = vsyncpa %s1012, 1

</llo_original>
